<compile_context>
chip_gen: v7x
topology: tpu7x:2x2x1
jax: 0.10.0
libtpu: 0.0.40
codegen_flags: <defaults>
</compile_context>

<pallas_src>
import functools

import jax
import jax.numpy as jnp
from jax.experimental import pallas as pl
from jax.experimental.pallas import tpu as pltpu

IN_FEATURES = 784
H1 = 512
H2 = 128
NUM_CLASSES = 10
DEFAULT_TILE_B = 1024


def mlp_kernel(x_ref, w1_ref, b1_ref, w2_ref, b2_ref, w3_ref, b3_ref, o_ref):
    # Cast the f32 input tile to bf16 in-register (no extra HBM pass in the
    # wrapper); MXU accumulates in f32 via preferred_element_type.
    x = x_ref[...].astype(jnp.bfloat16)
    # fc1 + ReLU
    h1 = jnp.dot(x, w1_ref[...], preferred_element_type=jnp.float32)
    h1 = jnp.maximum(h1 + b1_ref[...], 0.0).astype(jnp.bfloat16)
    # fc2 + ReLU
    h2 = jnp.dot(h1, w2_ref[...], preferred_element_type=jnp.float32)
    h2 = jnp.maximum(h2 + b2_ref[...], 0.0).astype(jnp.bfloat16)
    # fc3 (tiny: <1% of FLOPs; masked (tb, 10) store is cheap vs. the x DMA)
    logits = jnp.dot(h2, w3_ref[...], preferred_element_type=jnp.float32)
    logits = logits + b3_ref[...]
    # log_softmax over the class dimension, f32 with max-shift for stability
    m = jnp.max(logits, axis=-1, keepdims=True)
    shifted = logits - m
    lse = jnp.log(jnp.sum(jnp.exp(shifted), axis=-1, keepdims=True))
    o_ref[...] = (shifted - lse).astype(o_ref.dtype)


def _round_up(x, m):
    return (x + m - 1) // m * m


@functools.partial(jax.jit, static_argnames=("tile_b",))
def mynn_forward(x_nchw, params, tile_b=DEFAULT_TILE_B):
    """x_nchw: (B, 1, 28, 28) float32.  Returns (B, 10) f32 log-probabilities."""
    w1, b1, w2, b2, w3, b3 = params
    B = x_nchw.shape[0]
    # Same semantics as torch .view(-1, 784); contiguous reshape -> no HBM copy.
    x = x_nchw.reshape(B, IN_FEATURES)

    # Weights cast once per call to bf16 (~1 MiB total, negligible vs. x);
    # biases kept f32 for the f32 epilogue.
    w1b = w1.astype(jnp.bfloat16)
    w2b = w2.astype(jnp.bfloat16)
    w3b = w3.astype(jnp.bfloat16)
    b1f = b1.astype(jnp.float32)
    b2f = b2.astype(jnp.float32)
    b3f = b3.astype(jnp.float32)

    # Batch tile: multiple of 8 (sublane), capped at tile_b, and small enough
    # that the grid has >= 4 steps whenever B allows (pipelining + both v7x TCs).
    tb = min(tile_b, max(8, _round_up(pl.cdiv(B, 4), 8)))
    grid = (pl.cdiv(B, tb),)  # ragged final block: reads padded, writes masked

    # Default tile (<=1024) keeps the working set well inside every chip's
    # scoped-VMEM default; larger user-requested tiles (e.g. 2048-4096 on v6e)
    # get a raised limit.  Do not request >1024 tiles on v7x (64 MiB physical).
    vmem_limit = 32 * 1024 * 1024 if tb <= 1024 else 80 * 1024 * 1024

    n_wparams = IN_FEATURES * H1 + H1 * H2 + H2 * NUM_CLASSES
    cost = pl.CostEstimate(
        flops=2 * B * n_wparams,
        transcendentals=10 * B,  # exp in the logsumexp
        bytes_accessed=(B * IN_FEATURES * 4          # x (f32) read
                        + 2 * n_wparams              # bf16 weights
                        + 4 * (H1 + H2 + NUM_CLASSES)
                        + B * NUM_CLASSES * 4),      # output write
    )

    resident = lambda i: (0, 0)  # weights/biases stay resident across batch tiles
    out = pl.pallas_call(
        mlp_kernel,
        out_shape=jax.ShapeDtypeStruct((B, NUM_CLASSES), jnp.float32),
        grid=grid,
        in_specs=[
            pl.BlockSpec((tb, IN_FEATURES), lambda i: (i, 0)),   # x tile (pipelined)
            pl.BlockSpec((IN_FEATURES, H1), resident),           # w1
            pl.BlockSpec((1, H1), resident),                     # b1
            pl.BlockSpec((H1, H2), resident),                    # w2
            pl.BlockSpec((1, H2), resident),                     # b2
            pl.BlockSpec((H2, NUM_CLASSES), resident),           # w3
            pl.BlockSpec((1, NUM_CLASSES), resident),            # b3
        ],
        out_specs=pl.BlockSpec((tb, NUM_CLASSES), lambda i: (i, 0)),
        compiler_params=pltpu.CompilerParams(
            dimension_semantics=("parallel",),   # batch tiles across TCs on v7x
            vmem_limit_bytes=vmem_limit,
        ),
        cost_estimate=cost,
    )(x, w1b, b1f, w2b, b2f, w3b, b3f)
    return out


def init_params(key):
    """Deterministic init matching nn.Linear shapes (stored as (in, out))."""
    k1, k2, k3, k4, k5, k6 = jax.random.split(key, 6)

    def linear(kw, kb, fan_in, fan_out):
        bound = 1.0 / jnp.sqrt(fan_in)
        w = jax.random.uniform(kw, (fan_in, fan_out), jnp.float32, -bound, bound)
        b = jax.random.uniform(kb, (1, fan_out), jnp.float32, -bound, bound)
        return w, b

    w1, b1 = linear(k1, k2, 784, 512)
    w2, b2 = linear(k3, k4, 512, 128)
    w3, b3 = linear(k5, k6, 128, 10)
    return (w1, b1, w2, b2, w3, b3)


def _reference_forward(x_nchw, params):
    """Pure-JAX f32 reference of the PyTorch forward pass."""
    w1, b1, w2, b2, w3, b3 = params
    x = x_nchw.reshape(x_nchw.shape[0], IN_FEATURES)
    h1 = jnp.maximum(x @ w1 + b1, 0.0)
    h2 = jnp.maximum(h1 @ w2 + b2, 0.0)
    logits = h2 @ w3 + b3
    return jax.nn.log_softmax(logits, axis=1)


def _check(x, params):
    out = jax.block_until_ready(mynn_forward(x, params))
    assert out.shape == (x.shape[0], NUM_CLASSES)
    # log_softmax rows must exp-sum to 1
    assert bool(jnp.all(jnp.abs(jnp.sum(jnp.exp(out), axis=1) - 1.0) < 1e-3))
    # match the f32 reference within bf16 tolerance
    ref = _reference_forward(x, params)
    assert bool(jnp.max(jnp.abs(out - ref)) < 5e-2)
    return out


if __name__ == "__main__":
    key = jax.random.PRNGKey(0)
    k_params, k_x, k_x2 = jax.random.split(key, 3)
    params = init_params(k_params)

    # Small batch of MNIST-shaped inputs, NCHW like the PyTorch module.
    x_small = jax.random.uniform(k_x, (2, 1, 28, 28), jnp.float32)
    _check(x_small, params)

    # A batch that exercises the multi-step grid and the ragged final block
    # (B=100 -> tb=32, grid=(4,), last block masks rows 96..127 -> 96..99).
    x_big = jax.random.uniform(k_x2, (100, 1, 28, 28), jnp.float32)
    _check(x_big, params)

    print("KERNEL_OK")
</pallas_src>

<mosaic_0001>
module attributes {stable_mosaic.version = 11 : i64} {
  func.func @mlp_kernel(%arg0: i32, %arg1: memref<8x784xf32, #tpu.memory_space<vmem>>, %arg2: memref<784x512xbf16, #tpu.memory_space<vmem>>, %arg3: memref<1x512xf32, #tpu.memory_space<vmem>>, %arg4: memref<512x128xbf16, #tpu.memory_space<vmem>>, %arg5: memref<1x128xf32, #tpu.memory_space<vmem>>, %arg6: memref<128x10xbf16, #tpu.memory_space<vmem>>, %arg7: memref<1x10xf32, #tpu.memory_space<vmem>>, %arg8: memref<8x10xf32, #tpu.memory_space<vmem>>) attributes {dimension_semantics = [#tpu.dimension_semantics<parallel>], iteration_bounds = array<i64: 1>, scalar_prefetch = 0 : i64, scratch_operands = 0 : i64, tpu.core_type = #tpu.core_type<tc>, window_params = [{transform_indices = @transform_0, window_bounds = array<i64: 8, 784>}, {pipeline_mode = #tpu.pipeline_mode<synchronous>, transform_indices = @transform_1, window_bounds = array<i64: 784, 512>}, {pipeline_mode = #tpu.pipeline_mode<synchronous>, transform_indices = @transform_2, window_bounds = array<i64: 1, 512>}, {pipeline_mode = #tpu.pipeline_mode<synchronous>, transform_indices = @transform_3, window_bounds = array<i64: 512, 128>}, {pipeline_mode = #tpu.pipeline_mode<synchronous>, transform_indices = @transform_4, window_bounds = array<i64: 1, 128>}, {pipeline_mode = #tpu.pipeline_mode<synchronous>, transform_indices = @transform_5, window_bounds = array<i64: 128, 10>}, {pipeline_mode = #tpu.pipeline_mode<synchronous>, transform_indices = @transform_6, window_bounds = array<i64: 1, 10>}, {transform_indices = @transform_7, window_bounds = array<i64: 8, 10>}]} {
    %c0 = arith.constant 0 : index
    %c0_0 = arith.constant 0 : index
    %0 = vector.load %arg1[%c0, %c0_0] : memref<8x784xf32, #tpu.memory_space<vmem>>, vector<8x784xf32>
    %1 = arith.truncf %0 : vector<8x784xf32> to vector<8x784xbf16>
    %c0_1 = arith.constant 0 : index
    %c0_2 = arith.constant 0 : index
    %2 = vector.load %arg2[%c0_1, %c0_2] : memref<784x512xbf16, #tpu.memory_space<vmem>>, vector<784x512xbf16>
    %cst = arith.constant dense<0.000000e+00> : vector<8x512xf32>
    %3 = tpu.matmul %1, %2, %cst {dimension_numbers = #tpu.dot_dimension_numbers<[1], [0], [0], [1], [0, 0, 1, 1], [], []>} : vector<8x784xbf16>, vector<784x512xbf16>, vector<8x512xf32> -> vector<8x512xf32>
    %c0_3 = arith.constant 0 : index
    %c0_4 = arith.constant 0 : index
    %4 = vector.load %arg3[%c0_3, %c0_4] : memref<1x512xf32, #tpu.memory_space<vmem>>, vector<1x512xf32>
    %5 = vector.broadcast %4 : vector<1x512xf32> to vector<8x512xf32>
    %6 = arith.addf %3, %5 : vector<8x512xf32>
    %cst_5 = arith.constant 0.000000e+00 : f32
    %7 = vector.broadcast %cst_5 : f32 to vector<8x512xf32>
    %8 = arith.maximumf %6, %7 : vector<8x512xf32>
    %9 = arith.truncf %8 : vector<8x512xf32> to vector<8x512xbf16>
    %c0_6 = arith.constant 0 : index
    %c0_7 = arith.constant 0 : index
    %10 = vector.load %arg4[%c0_6, %c0_7] : memref<512x128xbf16, #tpu.memory_space<vmem>>, vector<512x128xbf16>
    %cst_8 = arith.constant dense<0.000000e+00> : vector<8x128xf32>
    %11 = tpu.matmul %9, %10, %cst_8 {dimension_numbers = #tpu.dot_dimension_numbers<[1], [0], [0], [1], [0, 0, 1, 1], [], []>} : vector<8x512xbf16>, vector<512x128xbf16>, vector<8x128xf32> -> vector<8x128xf32>
    %c0_9 = arith.constant 0 : index
    %c0_10 = arith.constant 0 : index
    %12 = vector.load %arg5[%c0_9, %c0_10] : memref<1x128xf32, #tpu.memory_space<vmem>>, vector<1x128xf32>
    %13 = vector.broadcast %12 : vector<1x128xf32> to vector<8x128xf32>
    %14 = arith.addf %11, %13 : vector<8x128xf32>
    %cst_11 = arith.constant 0.000000e+00 : f32
    %15 = vector.broadcast %cst_11 : f32 to vector<8x128xf32>
    %16 = arith.maximumf %14, %15 : vector<8x128xf32>
    %17 = arith.truncf %16 : vector<8x128xf32> to vector<8x128xbf16>
    %c0_12 = arith.constant 0 : index
    %c0_13 = arith.constant 0 : index
    %18 = vector.load %arg6[%c0_12, %c0_13] : memref<128x10xbf16, #tpu.memory_space<vmem>>, vector<128x10xbf16>
    %cst_14 = arith.constant dense<0.000000e+00> : vector<8x10xf32>
    %19 = tpu.matmul %17, %18, %cst_14 {dimension_numbers = #tpu.dot_dimension_numbers<[1], [0], [0], [1], [0, 0, 1, 1], [], []>} : vector<8x128xbf16>, vector<128x10xbf16>, vector<8x10xf32> -> vector<8x10xf32>
    %c0_15 = arith.constant 0 : index
    %c0_16 = arith.constant 0 : index
    %20 = vector.load %arg7[%c0_15, %c0_16] : memref<1x10xf32, #tpu.memory_space<vmem>>, vector<1x10xf32>
    %21 = vector.broadcast %20 : vector<1x10xf32> to vector<8x10xf32>
    %22 = arith.addf %19, %21 : vector<8x10xf32>
    %cst_17 = arith.constant dense<0xFF800000> : vector<8xf32>
    %23 = vector.multi_reduction <maximumf>, %22, %cst_17 [1] : vector<8x10xf32> to vector<8xf32>
    %24 = vector.shape_cast %23 : vector<8xf32> to vector<8x1xf32>
    %25 = vector.broadcast %24 : vector<8x1xf32> to vector<8x10xf32>
    %26 = arith.subf %22, %25 : vector<8x10xf32>
    %27 = math.exp %26 : vector<8x10xf32>
    %cst_18 = arith.constant dense<0.000000e+00> : vector<8xf32>
    %28 = vector.multi_reduction <add>, %27, %cst_18 [1] : vector<8x10xf32> to vector<8xf32>
    %29 = vector.shape_cast %28 : vector<8xf32> to vector<8x1xf32>
    %30 = math.log %29 : vector<8x1xf32>
    %31 = vector.broadcast %30 : vector<8x1xf32> to vector<8x10xf32>
    %32 = arith.subf %26, %31 : vector<8x10xf32>
    %c0_19 = arith.constant 0 : index
    %c0_20 = arith.constant 0 : index
    %33 = vector.load %arg8[%c0_19, %c0_20] : memref<8x10xf32, #tpu.memory_space<vmem>>, vector<8x10xf32>
    tpu.vector_store %arg8[%c0_19, %c0_20], %32 {strides = array<i32>} : memref<8x10xf32, #tpu.memory_space<vmem>>, vector<8x10xf32>,
    return
  }
  func.func @transform_0(%arg0: i32) -> (i32, i32) {
    %c0_i32 = arith.constant 0 : i32
    %c0_i32_0 = arith.constant 0 : i32
    return %arg0, %c0_i32 : i32, i32
  }
  func.func @transform_1(%arg0: i32) -> (i32, i32) {
    %c0_i32 = arith.constant 0 : i32
    %c0_i32_0 = arith.constant 0 : i32
    %c0_i32_1 = arith.constant 0 : i32
    return %c0_i32, %c0_i32_0 : i32, i32
  }
  func.func @transform_2(%arg0: i32) -> (i32, i32) {
    %c0_i32 = arith.constant 0 : i32
    %c0_i32_0 = arith.constant 0 : i32
    %c0_i32_1 = arith.constant 0 : i32
    return %c0_i32, %c0_i32_0 : i32, i32
  }
  func.func @transform_3(%arg0: i32) -> (i32, i32) {
    %c0_i32 = arith.constant 0 : i32
    %c0_i32_0 = arith.constant 0 : i32
    %c0_i32_1 = arith.constant 0 : i32
    return %c0_i32, %c0_i32_0 : i32, i32
  }
  func.func @transform_4(%arg0: i32) -> (i32, i32) {
    %c0_i32 = arith.constant 0 : i32
    %c0_i32_0 = arith.constant 0 : i32
    %c0_i32_1 = arith.constant 0 : i32
    return %c0_i32, %c0_i32_0 : i32, i32
  }
  func.func @transform_5(%arg0: i32) -> (i32, i32) {
    %c0_i32 = arith.constant 0 : i32
    %c0_i32_0 = arith.constant 0 : i32
    %c0_i32_1 = arith.constant 0 : i32
    return %c0_i32, %c0_i32_0 : i32, i32
  }
  func.func @transform_6(%arg0: i32) -> (i32, i32) {
    %c0_i32 = arith.constant 0 : i32
    %c0_i32_0 = arith.constant 0 : i32
    %c0_i32_1 = arith.constant 0 : i32
    return %c0_i32, %c0_i32_0 : i32, i32
  }
  func.func @transform_7(%arg0: i32) -> (i32, i32) {
    %c0_i32 = arith.constant 0 : i32
    %c0_i32_0 = arith.constant 0 : i32
    return %arg0, %c0_i32 : i32, i32
  }
}

</mosaic_0001>

<llo_original>
// kernel: mynn_forward.1
$region0: #{mynn_forward.1}
  #allocation0 [shape = 'u32[]', space=smem, size = 0x4, offset = 0x4, fixed_abs, tag = 'smem constant byte address 0x4 - core index']
  #allocation1 [shape = 'u32[144,128]{1,0:T(1,128)}', space=vmem, size = 0x12000, scoped, tag = 'internal scratch']
  %s0 = inlined_call_operand.vmem [shape: f32[2,784], index: 0, kind: input, shape index: {}]
  %s1 = inlined_call_operand.vmem [shape: bf16[784,512], index: 1, kind: input, shape index: {}]
  %s2 = inlined_call_operand.vmem [shape: f32[1,512], index: 2, kind: input, shape index: {}]
  %s3 = inlined_call_operand.vmem [shape: bf16[512,128], index: 3, kind: input, shape index: {}]
  %s4 = inlined_call_operand.vmem [shape: f32[1,128], index: 4, kind: input, shape index: {}]
  %s5 = inlined_call_operand.vmem [shape: bf16[128,10], index: 5, kind: input, shape index: {}]
  %s6 = inlined_call_operand.vmem [shape: f32[1,10], index: 6, kind: input, shape index: {}]
  %s7 = inlined_call_operand.hbm [shape: f32[2,10], index: 7, kind: output, shape index: {}]
  %s8 = sld [smem:[#allocation0]]
  $region38: #{mynn_forward.1} parent=0
    _
  %s10 = ssub.s32 1, %s8
  %s11 = scalar_select 0, %s10, %s8
  $region1: #{mynn_forward.1} parent=0
    #allocation2 [shape = 'u8[4096]{0}', space=vmem, size = 0x1000, scoped, tag = 'output window, operand 0, single buffered']
    #allocation3 [shape = 's32[1]{0}', space=sflag, size = 0x4, scoped, tag = 'scoped memory for mynn_forward.1']
    %12 = vsyncpa [#allocation3], 0
    // Predicated region
    $region2: #{mynn_forward.1} parent=1 // pred_check
      _
    $region3: #{mynn_forward.1} parent=1 // pred_check_branch
      %14 = sbr.rel (0) target = $region5
    $region4: #{mynn_forward.1} parent=1 // pred_region
      _
    $region5: #{mynn_forward.1} parent=1 // pred_fallthru
      _
    // Predicated region
    $region6: #{mynn_forward.1} parent=1 // pred_check
      _
    $region7: #{mynn_forward.1} parent=1 // pred_check_branch
      %16 = sbr.rel (0) target = $region9
    $region8: #{mynn_forward.1} parent=1 // pred_region
      _
    $region9: #{mynn_forward.1} parent=1 // pred_fallthru
      _
    // Predicated region
    $region10: #{mynn_forward.1} parent=1 // pred_check
      _
    $region11: #{mynn_forward.1} parent=1 // pred_check_branch
      %18 = sbr.rel (0) target = $region13
    $region12: #{mynn_forward.1} parent=1 // pred_region
      _
    $region13: #{mynn_forward.1} parent=1 // pred_fallthru
      _
    // Predicated region
    $region14: #{mynn_forward.1} parent=1 // pred_check
      _
    $region15: #{mynn_forward.1} parent=1 // pred_check_branch
      %20 = sbr.rel (0) target = $region17
    $region16: #{mynn_forward.1} parent=1 // pred_region
      _
    $region17: #{mynn_forward.1} parent=1 // pred_fallthru
      _
    // Predicated region
    $region18: #{mynn_forward.1} parent=1 // pred_check
      _
    $region19: #{mynn_forward.1} parent=1 // pred_check_branch
      %22 = sbr.rel (0) target = $region21
    $region20: #{mynn_forward.1} parent=1 // pred_region
      _
    $region21: #{mynn_forward.1} parent=1 // pred_fallthru
      _
    // Predicated region
    $region22: #{mynn_forward.1} parent=1 // pred_check
      _
    $region23: #{mynn_forward.1} parent=1 // pred_check_branch
      %24 = sbr.rel (0) target = $region25
    $region24: #{mynn_forward.1} parent=1 // pred_region
      _
    $region25: #{mynn_forward.1} parent=1 // pred_fallthru
      _
    // Predicated region
    $region26: #{mynn_forward.1} parent=1 // pred_check
      _
    $region27: #{mynn_forward.1} parent=1 // pred_check_branch
      %26 = sbr.rel (0) target = $region29
    $region28: #{mynn_forward.1} parent=1 // pred_region
      _
    $region29: #{mynn_forward.1} parent=1 // pred_fallthru
      _
    %v28 = vld [vmem:[%s0] sm:$0xff]
    %v29 = vld [vmem:[%s0 + $0x8] sm:$0x3f]
    %v30 = vld [vmem:[%s0 + $0xe] sm:$0xff]
    %v31 = vld [vmem:[%s0 + $0x16] sm:$0x3f]
    %v32 = vld [vmem:[%s0 + $0x1c] sm:$0xff]
    %v33 = vld [vmem:[%s0 + $0x24] sm:$0x3f]
    %v34 = vld [vmem:[%s0 + $0x2a] sm:$0xff]
    %v35 = vld [vmem:[%s0 + $0x32] sm:$0x3f]
    %v44 = vcombine.low %v28, %v30
    %v45 = vcombine.high %v28, %v30
    %v46 = vcombine.low %v32, %v34
    %v47 = vcombine.high %v32, %v34
    %v49 = vunpack.c.l.s4 1983009808
    %v50 = vunpack.c.0.s8 %v49
    %v51 = vlaneseq
    %v52 = vshrl.u32 %v51, 7
    %v53 = vsub.s32 %v50, %v52
    %v54 = vrot.slane %v44, %v53
    %v56 = vunpack.c.l.s4 1983009808
    %v57 = vunpack.c.0.s8 %v56
    %v58 = vlaneseq
    %v59 = vshrl.u32 %v58, 7
    %v60 = vsub.s32 %v57, %v59
    %v61 = vrot.slane %v45, %v60
    %v63 = vunpack.c.l.s4 1983009808
    %v64 = vunpack.c.0.s8 %v63
    %v65 = vlaneseq
    %v66 = vshrl.u32 %v65, 7
    %v67 = vsub.s32 %v64, %v66
    %v68 = vrot.slane %v46, %v67
    %v70 = vunpack.c.l.s4 1983009808
    %v71 = vunpack.c.0.s8 %v70
    %v72 = vlaneseq
    %v73 = vshrl.u32 %v72, 7
    %v74 = vsub.s32 %v71, %v73
    %v75 = vrot.slane %v47, %v74
    %v76 = vcombine.low %v54, %v68
    %v77 = vcombine.high %v54, %v68
    %v78 = vcombine.low %v61, %v75
    %v79 = vcombine.high %v61, %v75
    %v80 = vcombine.low %v29, %v31
    %v81 = vcombine.high %v29, %v31
    %v82 = vcombine.low %v33, %v35
    %v83 = vcombine.high %v33, %v35
    %v85 = vunpack.c.l.s4 1983009808
    %v86 = vunpack.c.0.s8 %v85
    %v87 = vlaneseq
    %v88 = vshrl.u32 %v87, 7
    %v89 = vsub.s32 %v86, %v88
    %v90 = vrot.slane %v80, %v89
    %v92 = vunpack.c.l.s4 1983009808
    %v93 = vunpack.c.0.s8 %v92
    %v94 = vlaneseq
    %v95 = vshrl.u32 %v94, 7
    %v96 = vsub.s32 %v93, %v95
    %v97 = vrot.slane %v81, %v96
    %v99 = vunpack.c.l.s4 1983009808
    %v100 = vunpack.c.0.s8 %v99
    %v101 = vlaneseq
    %v102 = vshrl.u32 %v101, 7
    %v103 = vsub.s32 %v100, %v102
    %v104 = vrot.slane %v82, %v103
    %v106 = vunpack.c.l.s4 1983009808
    %v107 = vunpack.c.0.s8 %v106
    %v108 = vlaneseq
    %v109 = vshrl.u32 %v108, 7
    %v110 = vsub.s32 %v107, %v109
    %v111 = vrot.slane %v83, %v110
    %v112 = vcombine.low %v90, %v104
    %v113 = vcombine.high %v90, %v104
    %v114 = vcombine.low %v97, %v111
    %v122 = vpack.c.bf16 %v76, %v76
    %v123 = vpack.c.bf16 %v77, %v77
    %v124 = vpack.c.bf16 %v78, %v78
    %v125 = vpack.c.bf16 %v79, %v79
    %v126 = vpack.c.bf16 %v112, %v112
    %v127 = vpack.c.bf16 %v113, %v113
    %v128 = vpack.c.bf16 %v114, %v114
    %v129 = vld [vmem:[%s1] sm:$0xff]
    %v130 = vld [vmem:[%s1 + $0x8] sm:$0xff]
    %v131 = vld [vmem:[%s1 + $0x10] sm:$0xff]
    %v132 = vld [vmem:[%s1 + $0x18] sm:$0xff]
    %v133 = vld [vmem:[%s1 + $0x20] sm:$0xff]
    %v134 = vld [vmem:[%s1 + $0x28] sm:$0xff]
    %v135 = vld [vmem:[%s1 + $0x30] sm:$0xff]
    %v136 = vld [vmem:[%s1 + $0x38] sm:$0xff]
    %v137 = vld [vmem:[%s1 + $0x40] sm:$0xff]
    %v138 = vld [vmem:[%s1 + $0x48] sm:$0xff]
    %v139 = vld [vmem:[%s1 + $0x50] sm:$0xff]
    %v140 = vld [vmem:[%s1 + $0x58] sm:$0xff]
    %v141 = vld [vmem:[%s1 + $0x60] sm:$0xff]
    %v142 = vld [vmem:[%s1 + $0x68] sm:$0xff]
    %v143 = vld [vmem:[%s1 + $0x70] sm:$0xff]
    %v144 = vld [vmem:[%s1 + $0x78] sm:$0xff]
    %v145 = vld [vmem:[%s1 + $0x80] sm:$0xff]
    %v146 = vld [vmem:[%s1 + $0x88] sm:$0xff]
    %v147 = vld [vmem:[%s1 + $0x90] sm:$0xff]
    %v148 = vld [vmem:[%s1 + $0x98] sm:$0xff]
    %v149 = vld [vmem:[%s1 + $0xa0] sm:$0xff]
    %v150 = vld [vmem:[%s1 + $0xa8] sm:$0xff]
    %v151 = vld [vmem:[%s1 + $0xb0] sm:$0xff]
    %v152 = vld [vmem:[%s1 + $0xb8] sm:$0xff]
    %v153 = vld [vmem:[%s1 + $0xc0] sm:$0xff]
    %v154 = vld [vmem:[%s1 + $0xc8] sm:$0xff]
    %v155 = vld [vmem:[%s1 + $0xd0] sm:$0xff]
    %v156 = vld [vmem:[%s1 + $0xd8] sm:$0xff]
    %v157 = vld [vmem:[%s1 + $0xe0] sm:$0xff]
    %v158 = vld [vmem:[%s1 + $0xe8] sm:$0xff]
    %v159 = vld [vmem:[%s1 + $0xf0] sm:$0xff]
    %v160 = vld [vmem:[%s1 + $0xf8] sm:$0xff]
    %v161 = vld [vmem:[%s1 + $0x100] sm:$0xff]
    %v162 = vld [vmem:[%s1 + $0x108] sm:$0xff]
    %v163 = vld [vmem:[%s1 + $0x110] sm:$0xff]
    %v164 = vld [vmem:[%s1 + $0x118] sm:$0xff]
    %v165 = vld [vmem:[%s1 + $0x120] sm:$0xff]
    %v166 = vld [vmem:[%s1 + $0x128] sm:$0xff]
    %v167 = vld [vmem:[%s1 + $0x130] sm:$0xff]
    %v168 = vld [vmem:[%s1 + $0x138] sm:$0xff]
    %v169 = vld [vmem:[%s1 + $0x140] sm:$0xff]
    %v170 = vld [vmem:[%s1 + $0x148] sm:$0xff]
    %v171 = vld [vmem:[%s1 + $0x150] sm:$0xff]
    %v172 = vld [vmem:[%s1 + $0x158] sm:$0xff]
    %v173 = vld [vmem:[%s1 + $0x160] sm:$0xff]
    %v174 = vld [vmem:[%s1 + $0x168] sm:$0xff]
    %v175 = vld [vmem:[%s1 + $0x170] sm:$0xff]
    %v176 = vld [vmem:[%s1 + $0x178] sm:$0xff]
    %v177 = vld [vmem:[%s1 + $0x180] sm:$0xff]
    %v178 = vld [vmem:[%s1 + $0x188] sm:$0xff]
    %v179 = vld [vmem:[%s1 + $0x190] sm:$0xff]
    %v180 = vld [vmem:[%s1 + $0x198] sm:$0xff]
    %v181 = vld [vmem:[%s1 + $0x1a0] sm:$0xff]
    %v182 = vld [vmem:[%s1 + $0x1a8] sm:$0xff]
    %v183 = vld [vmem:[%s1 + $0x1b0] sm:$0xff]
    %v184 = vld [vmem:[%s1 + $0x1b8] sm:$0xff]
    %v185 = vld [vmem:[%s1 + $0x1c0] sm:$0xff]
    %v186 = vld [vmem:[%s1 + $0x1c8] sm:$0xff]
    %v187 = vld [vmem:[%s1 + $0x1d0] sm:$0xff]
    %v188 = vld [vmem:[%s1 + $0x1d8] sm:$0xff]
    %v189 = vld [vmem:[%s1 + $0x1e0] sm:$0xff]
    %v190 = vld [vmem:[%s1 + $0x1e8] sm:$0xff]
    %v191 = vld [vmem:[%s1 + $0x1f0] sm:$0xff]
    %v192 = vld [vmem:[%s1 + $0x1f8] sm:$0xff]
    %v193 = vld [vmem:[%s1 + $0x200] sm:$0xff]
    %v194 = vld [vmem:[%s1 + $0x208] sm:$0xff]
    %v195 = vld [vmem:[%s1 + $0x210] sm:$0xff]
    %v196 = vld [vmem:[%s1 + $0x218] sm:$0xff]
    %v197 = vld [vmem:[%s1 + $0x220] sm:$0xff]
    %v198 = vld [vmem:[%s1 + $0x228] sm:$0xff]
    %v199 = vld [vmem:[%s1 + $0x230] sm:$0xff]
    %v200 = vld [vmem:[%s1 + $0x238] sm:$0xff]
    %v201 = vld [vmem:[%s1 + $0x240] sm:$0xff]
    %v202 = vld [vmem:[%s1 + $0x248] sm:$0xff]
    %v203 = vld [vmem:[%s1 + $0x250] sm:$0xff]
    %v204 = vld [vmem:[%s1 + $0x258] sm:$0xff]
    %v205 = vld [vmem:[%s1 + $0x260] sm:$0xff]
    %v206 = vld [vmem:[%s1 + $0x268] sm:$0xff]
    %v207 = vld [vmem:[%s1 + $0x270] sm:$0xff]
    %v208 = vld [vmem:[%s1 + $0x278] sm:$0xff]
    %v209 = vld [vmem:[%s1 + $0x280] sm:$0xff]
    %v210 = vld [vmem:[%s1 + $0x288] sm:$0xff]
    %v211 = vld [vmem:[%s1 + $0x290] sm:$0xff]
    %v212 = vld [vmem:[%s1 + $0x298] sm:$0xff]
    %v213 = vld [vmem:[%s1 + $0x2a0] sm:$0xff]
    %v214 = vld [vmem:[%s1 + $0x2a8] sm:$0xff]
    %v215 = vld [vmem:[%s1 + $0x2b0] sm:$0xff]
    %v216 = vld [vmem:[%s1 + $0x2b8] sm:$0xff]
    %v217 = vld [vmem:[%s1 + $0x2c0] sm:$0xff]
    %v218 = vld [vmem:[%s1 + $0x2c8] sm:$0xff]
    %v219 = vld [vmem:[%s1 + $0x2d0] sm:$0xff]
    %v220 = vld [vmem:[%s1 + $0x2d8] sm:$0xff]
    %v221 = vld [vmem:[%s1 + $0x2e0] sm:$0xff]
    %v222 = vld [vmem:[%s1 + $0x2e8] sm:$0xff]
    %v223 = vld [vmem:[%s1 + $0x2f0] sm:$0xff]
    %v224 = vld [vmem:[%s1 + $0x2f8] sm:$0xff]
    %v225 = vld [vmem:[%s1 + $0x300] sm:$0xff]
    %v226 = vld [vmem:[%s1 + $0x308] sm:$0xff]
    %v227 = vld [vmem:[%s1 + $0x310] sm:$0xff]
    %v228 = vld [vmem:[%s1 + $0x318] sm:$0xff]
    %v229 = vld [vmem:[%s1 + $0x320] sm:$0xff]
    %v230 = vld [vmem:[%s1 + $0x328] sm:$0xff]
    %v231 = vld [vmem:[%s1 + $0x330] sm:$0xff]
    %v232 = vld [vmem:[%s1 + $0x338] sm:$0xff]
    %v233 = vld [vmem:[%s1 + $0x340] sm:$0xff]
    %v234 = vld [vmem:[%s1 + $0x348] sm:$0xff]
    %v235 = vld [vmem:[%s1 + $0x350] sm:$0xff]
    %v236 = vld [vmem:[%s1 + $0x358] sm:$0xff]
    %v237 = vld [vmem:[%s1 + $0x360] sm:$0xff]
    %v238 = vld [vmem:[%s1 + $0x368] sm:$0xff]
    %v239 = vld [vmem:[%s1 + $0x370] sm:$0xff]
    %v240 = vld [vmem:[%s1 + $0x378] sm:$0xff]
    %v241 = vld [vmem:[%s1 + $0x380] sm:$0xff]
    %v242 = vld [vmem:[%s1 + $0x388] sm:$0xff]
    %v243 = vld [vmem:[%s1 + $0x390] sm:$0xff]
    %v244 = vld [vmem:[%s1 + $0x398] sm:$0xff]
    %v245 = vld [vmem:[%s1 + $0x3a0] sm:$0xff]
    %v246 = vld [vmem:[%s1 + $0x3a8] sm:$0xff]
    %v247 = vld [vmem:[%s1 + $0x3b0] sm:$0xff]
    %v248 = vld [vmem:[%s1 + $0x3b8] sm:$0xff]
    %v249 = vld [vmem:[%s1 + $0x3c0] sm:$0xff]
    %v250 = vld [vmem:[%s1 + $0x3c8] sm:$0xff]
    %v251 = vld [vmem:[%s1 + $0x3d0] sm:$0xff]
    %v252 = vld [vmem:[%s1 + $0x3d8] sm:$0xff]
    %v253 = vld [vmem:[%s1 + $0x3e0] sm:$0xff]
    %v254 = vld [vmem:[%s1 + $0x3e8] sm:$0xff]
    %v255 = vld [vmem:[%s1 + $0x3f0] sm:$0xff]
    %v256 = vld [vmem:[%s1 + $0x3f8] sm:$0xff]
    %v257 = vld [vmem:[%s1 + $0x400] sm:$0xff]
    %v258 = vld [vmem:[%s1 + $0x408] sm:$0xff]
    %v259 = vld [vmem:[%s1 + $0x410] sm:$0xff]
    %v260 = vld [vmem:[%s1 + $0x418] sm:$0xff]
    %v261 = vld [vmem:[%s1 + $0x420] sm:$0xff]
    %v262 = vld [vmem:[%s1 + $0x428] sm:$0xff]
    %v263 = vld [vmem:[%s1 + $0x430] sm:$0xff]
    %v264 = vld [vmem:[%s1 + $0x438] sm:$0xff]
    %v265 = vld [vmem:[%s1 + $0x440] sm:$0xff]
    %v266 = vld [vmem:[%s1 + $0x448] sm:$0xff]
    %v267 = vld [vmem:[%s1 + $0x450] sm:$0xff]
    %v268 = vld [vmem:[%s1 + $0x458] sm:$0xff]
    %v269 = vld [vmem:[%s1 + $0x460] sm:$0xff]
    %v270 = vld [vmem:[%s1 + $0x468] sm:$0xff]
    %v271 = vld [vmem:[%s1 + $0x470] sm:$0xff]
    %v272 = vld [vmem:[%s1 + $0x478] sm:$0xff]
    %v273 = vld [vmem:[%s1 + $0x480] sm:$0xff]
    %v274 = vld [vmem:[%s1 + $0x488] sm:$0xff]
    %v275 = vld [vmem:[%s1 + $0x490] sm:$0xff]
    %v276 = vld [vmem:[%s1 + $0x498] sm:$0xff]
    %v277 = vld [vmem:[%s1 + $0x4a0] sm:$0xff]
    %v278 = vld [vmem:[%s1 + $0x4a8] sm:$0xff]
    %v279 = vld [vmem:[%s1 + $0x4b0] sm:$0xff]
    %v280 = vld [vmem:[%s1 + $0x4b8] sm:$0xff]
    %v281 = vld [vmem:[%s1 + $0x4c0] sm:$0xff]
    %v282 = vld [vmem:[%s1 + $0x4c8] sm:$0xff]
    %v283 = vld [vmem:[%s1 + $0x4d0] sm:$0xff]
    %v284 = vld [vmem:[%s1 + $0x4d8] sm:$0xff]
    %v285 = vld [vmem:[%s1 + $0x4e0] sm:$0xff]
    %v286 = vld [vmem:[%s1 + $0x4e8] sm:$0xff]
    %v287 = vld [vmem:[%s1 + $0x4f0] sm:$0xff]
    %v288 = vld [vmem:[%s1 + $0x4f8] sm:$0xff]
    %v289 = vld [vmem:[%s1 + $0x500] sm:$0xff]
    %v290 = vld [vmem:[%s1 + $0x508] sm:$0xff]
    %v291 = vld [vmem:[%s1 + $0x510] sm:$0xff]
    %v292 = vld [vmem:[%s1 + $0x518] sm:$0xff]
    %v293 = vld [vmem:[%s1 + $0x520] sm:$0xff]
    %v294 = vld [vmem:[%s1 + $0x528] sm:$0xff]
    %v295 = vld [vmem:[%s1 + $0x530] sm:$0xff]
    %v296 = vld [vmem:[%s1 + $0x538] sm:$0xff]
    %v297 = vld [vmem:[%s1 + $0x540] sm:$0xff]
    %v298 = vld [vmem:[%s1 + $0x548] sm:$0xff]
    %v299 = vld [vmem:[%s1 + $0x550] sm:$0xff]
    %v300 = vld [vmem:[%s1 + $0x558] sm:$0xff]
    %v301 = vld [vmem:[%s1 + $0x560] sm:$0xff]
    %v302 = vld [vmem:[%s1 + $0x568] sm:$0xff]
    %v303 = vld [vmem:[%s1 + $0x570] sm:$0xff]
    %v304 = vld [vmem:[%s1 + $0x578] sm:$0xff]
    %v305 = vld [vmem:[%s1 + $0x580] sm:$0xff]
    %v306 = vld [vmem:[%s1 + $0x588] sm:$0xff]
    %v307 = vld [vmem:[%s1 + $0x590] sm:$0xff]
    %v308 = vld [vmem:[%s1 + $0x598] sm:$0xff]
    %v309 = vld [vmem:[%s1 + $0x5a0] sm:$0xff]
    %v310 = vld [vmem:[%s1 + $0x5a8] sm:$0xff]
    %v311 = vld [vmem:[%s1 + $0x5b0] sm:$0xff]
    %v312 = vld [vmem:[%s1 + $0x5b8] sm:$0xff]
    %v313 = vld [vmem:[%s1 + $0x5c0] sm:$0xff]
    %v314 = vld [vmem:[%s1 + $0x5c8] sm:$0xff]
    %v315 = vld [vmem:[%s1 + $0x5d0] sm:$0xff]
    %v316 = vld [vmem:[%s1 + $0x5d8] sm:$0xff]
    %v317 = vld [vmem:[%s1 + $0x5e0] sm:$0xff]
    %v318 = vld [vmem:[%s1 + $0x5e8] sm:$0xff]
    %v319 = vld [vmem:[%s1 + $0x5f0] sm:$0xff]
    %v320 = vld [vmem:[%s1 + $0x5f8] sm:$0xff]
    %v321 = vld [vmem:[%s1 + $0x600] sm:$0xff]
    %v322 = vld [vmem:[%s1 + $0x608] sm:$0xff]
    %v323 = vld [vmem:[%s1 + $0x610] sm:$0xff]
    %v324 = vld [vmem:[%s1 + $0x618] sm:$0xff]
    %v325 = vld [vmem:[%s2] sm:$0xf]
    %v327 = vlaneseq
    %v328 = vshrl.u32 %v327, 7
    %v329 = vsub.s32 0, %v328
    %v330 = vrot.slane %v325, %v329
    %v331 = vlaneseq
    %v332 = vshrl.u32 %v331, 7
    %v333 = vsub.s32 1, %v332
    %v334 = vrot.slane %v325, %v333
    %v335 = vlaneseq
    %v336 = vshrl.u32 %v335, 7
    %v337 = vsub.s32 2, %v336
    %v338 = vrot.slane %v325, %v337
    %v339 = vlaneseq
    %v340 = vshrl.u32 %v339, 7
    %v341 = vsub.s32 3, %v340
    %v342 = vrot.slane %v325, %v341
    %v543 = vunpack.c.l.b16 %v129
    %v544 = vunpack.c.h.b16 %v129
    %v545 = vunpack.c.l.b16 %v130
    %v546 = vunpack.c.h.b16 %v130
    %v547 = vunpack.c.l.b16 %v131
    %v548 = vunpack.c.h.b16 %v131
    %v549 = vunpack.c.l.b16 %v132
    %v550 = vunpack.c.h.b16 %v132
    %v551 = vunpack.c.l.b16 %v133
    %v552 = vunpack.c.h.b16 %v133
    %v553 = vunpack.c.l.b16 %v134
    %v554 = vunpack.c.h.b16 %v134
    %v555 = vunpack.c.l.b16 %v135
    %v556 = vunpack.c.h.b16 %v135
    %v557 = vunpack.c.l.b16 %v136
    %v558 = vunpack.c.h.b16 %v136
    %v559 = vunpack.c.l.b16 %v137
    %v560 = vunpack.c.h.b16 %v137
    %v561 = vunpack.c.l.b16 %v138
    %v562 = vunpack.c.h.b16 %v138
    %v563 = vunpack.c.l.b16 %v139
    %v564 = vunpack.c.h.b16 %v139
    %v565 = vunpack.c.l.b16 %v140
    %v566 = vunpack.c.h.b16 %v140
    %v567 = vunpack.c.l.b16 %v141
    %v568 = vunpack.c.h.b16 %v141
    %v569 = vunpack.c.l.b16 %v142
    %v570 = vunpack.c.h.b16 %v142
    %v571 = vunpack.c.l.b16 %v143
    %v572 = vunpack.c.h.b16 %v143
    %v573 = vunpack.c.l.b16 %v144
    %v574 = vunpack.c.h.b16 %v144
    %v575 = vunpack.c.l.b16 %v145
    %v576 = vunpack.c.h.b16 %v145
    %v577 = vunpack.c.l.b16 %v146
    %v578 = vunpack.c.h.b16 %v146
    %v579 = vunpack.c.l.b16 %v147
    %v580 = vunpack.c.h.b16 %v147
    %v581 = vunpack.c.l.b16 %v148
    %v582 = vunpack.c.h.b16 %v148
    %v583 = vunpack.c.l.b16 %v149
    %v584 = vunpack.c.h.b16 %v149
    %v585 = vunpack.c.l.b16 %v150
    %v586 = vunpack.c.h.b16 %v150
    %v587 = vunpack.c.l.b16 %v151
    %v588 = vunpack.c.h.b16 %v151
    %v589 = vunpack.c.l.b16 %v152
    %v590 = vunpack.c.h.b16 %v152
    %v591 = vunpack.c.l.b16 %v153
    %v592 = vunpack.c.h.b16 %v153
    %v593 = vunpack.c.l.b16 %v154
    %v594 = vunpack.c.h.b16 %v154
    %v595 = vunpack.c.l.b16 %v155
    %v596 = vunpack.c.h.b16 %v155
    %v597 = vunpack.c.l.b16 %v156
    %v598 = vunpack.c.h.b16 %v156
    %v599 = vunpack.c.l.b16 %v157
    %v600 = vunpack.c.h.b16 %v157
    %v601 = vunpack.c.l.b16 %v158
    %v602 = vunpack.c.h.b16 %v158
    %v603 = vunpack.c.l.b16 %v159
    %v604 = vunpack.c.h.b16 %v159
    %v605 = vunpack.c.l.b16 %v160
    %v606 = vunpack.c.h.b16 %v160
    %v607 = vunpack.c.l.b16 %v161
    %v608 = vunpack.c.h.b16 %v161
    %v609 = vunpack.c.l.b16 %v162
    %v610 = vunpack.c.h.b16 %v162
    %v611 = vunpack.c.l.b16 %v163
    %v612 = vunpack.c.h.b16 %v163
    %v613 = vunpack.c.l.b16 %v164
    %v614 = vunpack.c.h.b16 %v164
    %v615 = vunpack.c.l.b16 %v165
    %v616 = vunpack.c.h.b16 %v165
    %v617 = vunpack.c.l.b16 %v166
    %v618 = vunpack.c.h.b16 %v166
    %v619 = vunpack.c.l.b16 %v167
    %v620 = vunpack.c.h.b16 %v167
    %v621 = vunpack.c.l.b16 %v168
    %v622 = vunpack.c.h.b16 %v168
    %v623 = vunpack.c.l.b16 %v169
    %v624 = vunpack.c.h.b16 %v169
    %v625 = vunpack.c.l.b16 %v170
    %v626 = vunpack.c.h.b16 %v170
    %v627 = vunpack.c.l.b16 %v171
    %v628 = vunpack.c.h.b16 %v171
    %v629 = vunpack.c.l.b16 %v172
    %v630 = vunpack.c.h.b16 %v172
    %v631 = vunpack.c.l.b16 %v173
    %v632 = vunpack.c.h.b16 %v173
    %v633 = vunpack.c.l.b16 %v174
    %v634 = vunpack.c.h.b16 %v174
    %v635 = vunpack.c.l.b16 %v175
    %v636 = vunpack.c.h.b16 %v175
    %v637 = vunpack.c.l.b16 %v176
    %v638 = vunpack.c.h.b16 %v176
    %v639 = vunpack.c.l.b16 %v177
    %v640 = vunpack.c.h.b16 %v177
    %v641 = vunpack.c.l.b16 %v178
    %v642 = vunpack.c.h.b16 %v178
    %v643 = vunpack.c.l.b16 %v179
    %v644 = vunpack.c.h.b16 %v179
    %v645 = vunpack.c.l.b16 %v180
    %v646 = vunpack.c.h.b16 %v180
    %v647 = vunpack.c.l.b16 %v181
    %v648 = vunpack.c.h.b16 %v181
    %v649 = vunpack.c.l.b16 %v182
    %v650 = vunpack.c.h.b16 %v182
    %v651 = vunpack.c.l.b16 %v183
    %v652 = vunpack.c.h.b16 %v183
    %v653 = vunpack.c.l.b16 %v184
    %v654 = vunpack.c.h.b16 %v184
    %v655 = vunpack.c.l.b16 %v185
    %v656 = vunpack.c.h.b16 %v185
    %v657 = vunpack.c.l.b16 %v186
    %v658 = vunpack.c.h.b16 %v186
    %v659 = vunpack.c.l.b16 %v187
    %v660 = vunpack.c.h.b16 %v187
    %v661 = vunpack.c.l.b16 %v188
    %v662 = vunpack.c.h.b16 %v188
    %v663 = vunpack.c.l.b16 %v189
    %v664 = vunpack.c.h.b16 %v189
    %v665 = vunpack.c.l.b16 %v190
    %v666 = vunpack.c.h.b16 %v190
    %v667 = vunpack.c.l.b16 %v191
    %v668 = vunpack.c.h.b16 %v191
    %v669 = vunpack.c.l.b16 %v192
    %v670 = vunpack.c.h.b16 %v192
    %v671 = vunpack.c.l.b16 %v193
    %v672 = vunpack.c.h.b16 %v193
    %v673 = vunpack.c.l.b16 %v194
    %v674 = vunpack.c.h.b16 %v194
    %v675 = vunpack.c.l.b16 %v195
    %v676 = vunpack.c.h.b16 %v195
    %v677 = vunpack.c.l.b16 %v196
    %v678 = vunpack.c.h.b16 %v196
    %v679 = vunpack.c.l.b16 %v197
    %v680 = vunpack.c.h.b16 %v197
    %v681 = vunpack.c.l.b16 %v198
    %v682 = vunpack.c.h.b16 %v198
    %v683 = vunpack.c.l.b16 %v199
    %v684 = vunpack.c.h.b16 %v199
    %v685 = vunpack.c.l.b16 %v200
    %v686 = vunpack.c.h.b16 %v200
    %v687 = vunpack.c.l.b16 %v201
    %v688 = vunpack.c.h.b16 %v201
    %v689 = vunpack.c.l.b16 %v202
    %v690 = vunpack.c.h.b16 %v202
    %v691 = vunpack.c.l.b16 %v203
    %v692 = vunpack.c.h.b16 %v203
    %v693 = vunpack.c.l.b16 %v204
    %v694 = vunpack.c.h.b16 %v204
    %v695 = vunpack.c.l.b16 %v205
    %v696 = vunpack.c.h.b16 %v205
    %v697 = vunpack.c.l.b16 %v206
    %v698 = vunpack.c.h.b16 %v206
    %v699 = vunpack.c.l.b16 %v207
    %v700 = vunpack.c.h.b16 %v207
    %v701 = vunpack.c.l.b16 %v208
    %v702 = vunpack.c.h.b16 %v208
    %v703 = vunpack.c.l.b16 %v209
    %v704 = vunpack.c.h.b16 %v209
    %v705 = vunpack.c.l.b16 %v210
    %v706 = vunpack.c.h.b16 %v210
    %v707 = vunpack.c.l.b16 %v211
    %v708 = vunpack.c.h.b16 %v211
    %v709 = vunpack.c.l.b16 %v212
    %v710 = vunpack.c.h.b16 %v212
    %v711 = vunpack.c.l.b16 %v213
    %v712 = vunpack.c.h.b16 %v213
    %v713 = vunpack.c.l.b16 %v214
    %v714 = vunpack.c.h.b16 %v214
    %v715 = vunpack.c.l.b16 %v215
    %v716 = vunpack.c.h.b16 %v215
    %v717 = vunpack.c.l.b16 %v216
    %v718 = vunpack.c.h.b16 %v216
    %v719 = vunpack.c.l.b16 %v217
    %v720 = vunpack.c.h.b16 %v217
    %v721 = vunpack.c.l.b16 %v218
    %v722 = vunpack.c.h.b16 %v218
    %v723 = vunpack.c.l.b16 %v219
    %v724 = vunpack.c.h.b16 %v219
    %v725 = vunpack.c.l.b16 %v220
    %v726 = vunpack.c.h.b16 %v220
    %v727 = vunpack.c.l.b16 %v221
    %v728 = vunpack.c.h.b16 %v221
    %v729 = vunpack.c.l.b16 %v222
    %v730 = vunpack.c.h.b16 %v222
    %v731 = vunpack.c.l.b16 %v223
    %v732 = vunpack.c.h.b16 %v223
    %v733 = vunpack.c.l.b16 %v224
    %v734 = vunpack.c.h.b16 %v224
    %v735 = vunpack.c.l.b16 %v225
    %v736 = vunpack.c.h.b16 %v225
    %v737 = vunpack.c.l.b16 %v226
    %v738 = vunpack.c.h.b16 %v226
    %v739 = vunpack.c.l.b16 %v227
    %v740 = vunpack.c.h.b16 %v227
    %v741 = vunpack.c.l.b16 %v228
    %v742 = vunpack.c.h.b16 %v228
    %v743 = vunpack.c.l.b16 %v229
    %v744 = vunpack.c.h.b16 %v229
    %v745 = vunpack.c.l.b16 %v230
    %v746 = vunpack.c.h.b16 %v230
    %v747 = vunpack.c.l.b16 %v231
    %v748 = vunpack.c.h.b16 %v231
    %v749 = vunpack.c.l.b16 %v232
    %v750 = vunpack.c.h.b16 %v232
    %v751 = vunpack.c.l.b16 %v233
    %v752 = vunpack.c.h.b16 %v233
    %v753 = vunpack.c.l.b16 %v234
    %v754 = vunpack.c.h.b16 %v234
    %v755 = vunpack.c.l.b16 %v235
    %v756 = vunpack.c.h.b16 %v235
    %v757 = vunpack.c.l.b16 %v236
    %v758 = vunpack.c.h.b16 %v236
    %v759 = vunpack.c.l.b16 %v237
    %v760 = vunpack.c.h.b16 %v237
    %v761 = vunpack.c.l.b16 %v238
    %v762 = vunpack.c.h.b16 %v238
    %v763 = vunpack.c.l.b16 %v239
    %v764 = vunpack.c.h.b16 %v239
    %v765 = vunpack.c.l.b16 %v240
    %v766 = vunpack.c.h.b16 %v240
    %v767 = vunpack.c.l.b16 %v241
    %v768 = vunpack.c.h.b16 %v241
    %v769 = vunpack.c.l.b16 %v242
    %v770 = vunpack.c.h.b16 %v242
    %v771 = vunpack.c.l.b16 %v243
    %v772 = vunpack.c.h.b16 %v243
    %v773 = vunpack.c.l.b16 %v244
    %v774 = vunpack.c.h.b16 %v244
    %v775 = vunpack.c.l.b16 %v245
    %v776 = vunpack.c.h.b16 %v245
    %v777 = vunpack.c.l.b16 %v246
    %v778 = vunpack.c.h.b16 %v246
    %v779 = vunpack.c.l.b16 %v247
    %v780 = vunpack.c.h.b16 %v247
    %v781 = vunpack.c.l.b16 %v248
    %v782 = vunpack.c.h.b16 %v248
    %v783 = vunpack.c.l.b16 %v249
    %v784 = vunpack.c.h.b16 %v249
    %v785 = vunpack.c.l.b16 %v250
    %v786 = vunpack.c.h.b16 %v250
    %v787 = vunpack.c.l.b16 %v251
    %v788 = vunpack.c.h.b16 %v251
    %v789 = vunpack.c.l.b16 %v252
    %v790 = vunpack.c.h.b16 %v252
    %v791 = vunpack.c.l.b16 %v253
    %v792 = vunpack.c.h.b16 %v253
    %v793 = vunpack.c.l.b16 %v254
    %v794 = vunpack.c.h.b16 %v254
    %v795 = vunpack.c.l.b16 %v255
    %v796 = vunpack.c.h.b16 %v255
    %v797 = vunpack.c.l.b16 %v256
    %v798 = vunpack.c.h.b16 %v256
    %v799 = vunpack.c.l.b16 %v257
    %v800 = vunpack.c.h.b16 %v257
    %v801 = vunpack.c.l.b16 %v258
    %v802 = vunpack.c.h.b16 %v258
    %v803 = vunpack.c.l.b16 %v259
    %v804 = vunpack.c.h.b16 %v259
    %v805 = vunpack.c.l.b16 %v260
    %v806 = vunpack.c.h.b16 %v260
    %v807 = vunpack.c.l.b16 %v261
    %v808 = vunpack.c.h.b16 %v261
    %v809 = vunpack.c.l.b16 %v262
    %v810 = vunpack.c.h.b16 %v262
    %v811 = vunpack.c.l.b16 %v263
    %v812 = vunpack.c.h.b16 %v263
    %v813 = vunpack.c.l.b16 %v264
    %v814 = vunpack.c.h.b16 %v264
    %v815 = vunpack.c.l.b16 %v265
    %v816 = vunpack.c.h.b16 %v265
    %v817 = vunpack.c.l.b16 %v266
    %v818 = vunpack.c.h.b16 %v266
    %v819 = vunpack.c.l.b16 %v267
    %v820 = vunpack.c.h.b16 %v267
    %v821 = vunpack.c.l.b16 %v268
    %v822 = vunpack.c.h.b16 %v268
    %v823 = vunpack.c.l.b16 %v269
    %v824 = vunpack.c.h.b16 %v269
    %v825 = vunpack.c.l.b16 %v270
    %v826 = vunpack.c.h.b16 %v270
    %v827 = vunpack.c.l.b16 %v271
    %v828 = vunpack.c.h.b16 %v271
    %v829 = vunpack.c.l.b16 %v272
    %v830 = vunpack.c.h.b16 %v272
    %v831 = vunpack.c.l.b16 %v273
    %v832 = vunpack.c.h.b16 %v273
    %v833 = vunpack.c.l.b16 %v274
    %v834 = vunpack.c.h.b16 %v274
    %v835 = vunpack.c.l.b16 %v275
    %v836 = vunpack.c.h.b16 %v275
    %v837 = vunpack.c.l.b16 %v276
    %v838 = vunpack.c.h.b16 %v276
    %v839 = vunpack.c.l.b16 %v277
    %v840 = vunpack.c.h.b16 %v277
    %v841 = vunpack.c.l.b16 %v278
    %v842 = vunpack.c.h.b16 %v278
    %v843 = vunpack.c.l.b16 %v279
    %v844 = vunpack.c.h.b16 %v279
    %v845 = vunpack.c.l.b16 %v280
    %v846 = vunpack.c.h.b16 %v280
    %v847 = vunpack.c.l.b16 %v281
    %v848 = vunpack.c.h.b16 %v281
    %v849 = vunpack.c.l.b16 %v282
    %v850 = vunpack.c.h.b16 %v282
    %v851 = vunpack.c.l.b16 %v283
    %v852 = vunpack.c.h.b16 %v283
    %v853 = vunpack.c.l.b16 %v284
    %v854 = vunpack.c.h.b16 %v284
    %v855 = vunpack.c.l.b16 %v285
    %v856 = vunpack.c.h.b16 %v285
    %v857 = vunpack.c.l.b16 %v286
    %v858 = vunpack.c.h.b16 %v286
    %v859 = vunpack.c.l.b16 %v287
    %v860 = vunpack.c.h.b16 %v287
    %v861 = vunpack.c.l.b16 %v288
    %v862 = vunpack.c.h.b16 %v288
    %v863 = vunpack.c.l.b16 %v289
    %v864 = vunpack.c.h.b16 %v289
    %v865 = vunpack.c.l.b16 %v290
    %v866 = vunpack.c.h.b16 %v290
    %v867 = vunpack.c.l.b16 %v291
    %v868 = vunpack.c.h.b16 %v291
    %v869 = vunpack.c.l.b16 %v292
    %v870 = vunpack.c.h.b16 %v292
    %v871 = vunpack.c.l.b16 %v293
    %v872 = vunpack.c.h.b16 %v293
    %v873 = vunpack.c.l.b16 %v294
    %v874 = vunpack.c.h.b16 %v294
    %v875 = vunpack.c.l.b16 %v295
    %v876 = vunpack.c.h.b16 %v295
    %v877 = vunpack.c.l.b16 %v296
    %v878 = vunpack.c.h.b16 %v296
    %v879 = vunpack.c.l.b16 %v297
    %v880 = vunpack.c.h.b16 %v297
    %v881 = vunpack.c.l.b16 %v298
    %v882 = vunpack.c.h.b16 %v298
    %v883 = vunpack.c.l.b16 %v299
    %v884 = vunpack.c.h.b16 %v299
    %v885 = vunpack.c.l.b16 %v300
    %v886 = vunpack.c.h.b16 %v300
    %v887 = vunpack.c.l.b16 %v301
    %v888 = vunpack.c.h.b16 %v301
    %v889 = vunpack.c.l.b16 %v302
    %v890 = vunpack.c.h.b16 %v302
    %v891 = vunpack.c.l.b16 %v303
    %v892 = vunpack.c.h.b16 %v303
    %v893 = vunpack.c.l.b16 %v304
    %v894 = vunpack.c.h.b16 %v304
    %v895 = vunpack.c.l.b16 %v305
    %v896 = vunpack.c.h.b16 %v305
    %v897 = vunpack.c.l.b16 %v306
    %v898 = vunpack.c.h.b16 %v306
    %v899 = vunpack.c.l.b16 %v307
    %v900 = vunpack.c.h.b16 %v307
    %v901 = vunpack.c.l.b16 %v308
    %v902 = vunpack.c.h.b16 %v308
    %v903 = vunpack.c.l.b16 %v309
    %v904 = vunpack.c.h.b16 %v309
    %v905 = vunpack.c.l.b16 %v310
    %v906 = vunpack.c.h.b16 %v310
    %v907 = vunpack.c.l.b16 %v311
    %v908 = vunpack.c.h.b16 %v311
    %v909 = vunpack.c.l.b16 %v312
    %v910 = vunpack.c.h.b16 %v312
    %v911 = vunpack.c.l.b16 %v313
    %v912 = vunpack.c.h.b16 %v313
    %v913 = vunpack.c.l.b16 %v314
    %v914 = vunpack.c.h.b16 %v314
    %v915 = vunpack.c.l.b16 %v315
    %v916 = vunpack.c.h.b16 %v315
    %v917 = vunpack.c.l.b16 %v316
    %v918 = vunpack.c.h.b16 %v316
    %v919 = vunpack.c.l.b16 %v317
    %v920 = vunpack.c.h.b16 %v317
    %v921 = vunpack.c.l.b16 %v318
    %v922 = vunpack.c.h.b16 %v318
    %v923 = vunpack.c.l.b16 %v319
    %v924 = vunpack.c.h.b16 %v319
    %v925 = vunpack.c.l.b16 %v320
    %v926 = vunpack.c.h.b16 %v320
    %v927 = vunpack.c.l.b16 %v321
    %v928 = vunpack.c.h.b16 %v321
    %v929 = vunpack.c.l.b16 %v322
    %v930 = vunpack.c.h.b16 %v322
    %v931 = vunpack.c.l.b16 %v323
    %v932 = vunpack.c.h.b16 %v323
    %v933 = vunpack.c.l.b16 %v324
    %v934 = vunpack.c.h.b16 %v324
    %v935 = vpack.c.b16 %v547, %v543
    %v936 = vpack.c.b16 %v548, %v544
    %v937 = vpack.c.b16 %v549, %v545
    %v938 = vpack.c.b16 %v550, %v546
    %v939 = vpack.c.b16 %v555, %v551
    %v940 = vpack.c.b16 %v556, %v552
    %v941 = vpack.c.b16 %v557, %v553
    %v942 = vpack.c.b16 %v558, %v554
    %v943 = vpack.c.b16 %v563, %v559
    %v944 = vpack.c.b16 %v564, %v560
    %v945 = vpack.c.b16 %v565, %v561
    %v946 = vpack.c.b16 %v566, %v562
    %v947 = vpack.c.b16 %v571, %v567
    %v948 = vpack.c.b16 %v572, %v568
    %v949 = vpack.c.b16 %v573, %v569
    %v950 = vpack.c.b16 %v574, %v570
    %v951 = vpack.c.b16 %v579, %v575
    %v952 = vpack.c.b16 %v580, %v576
    %v953 = vpack.c.b16 %v581, %v577
    %v954 = vpack.c.b16 %v582, %v578
    %v955 = vpack.c.b16 %v587, %v583
    %v956 = vpack.c.b16 %v588, %v584
    %v957 = vpack.c.b16 %v589, %v585
    %v958 = vpack.c.b16 %v590, %v586
    %v959 = vpack.c.b16 %v595, %v591
    %v960 = vpack.c.b16 %v596, %v592
    %v961 = vpack.c.b16 %v597, %v593
    %v962 = vpack.c.b16 %v598, %v594
    %v963 = vpack.c.b16 %v603, %v599
    %v964 = vpack.c.b16 %v604, %v600
    %v965 = vpack.c.b16 %v605, %v601
    %v966 = vpack.c.b16 %v606, %v602
    %v967 = vpack.c.b16 %v611, %v607
    %v968 = vpack.c.b16 %v612, %v608
    %v969 = vpack.c.b16 %v613, %v609
    %v970 = vpack.c.b16 %v614, %v610
    %v971 = vpack.c.b16 %v619, %v615
    %v972 = vpack.c.b16 %v620, %v616
    %v973 = vpack.c.b16 %v621, %v617
    %v974 = vpack.c.b16 %v622, %v618
    %v975 = vpack.c.b16 %v627, %v623
    %v976 = vpack.c.b16 %v628, %v624
    %v977 = vpack.c.b16 %v629, %v625
    %v978 = vpack.c.b16 %v630, %v626
    %v979 = vpack.c.b16 %v635, %v631
    %v980 = vpack.c.b16 %v636, %v632
    %v981 = vpack.c.b16 %v637, %v633
    %v982 = vpack.c.b16 %v638, %v634
    %v983 = vpack.c.b16 %v643, %v639
    %v984 = vpack.c.b16 %v644, %v640
    %v985 = vpack.c.b16 %v645, %v641
    %v986 = vpack.c.b16 %v646, %v642
    %v987 = vpack.c.b16 %v651, %v647
    %v988 = vpack.c.b16 %v652, %v648
    %v989 = vpack.c.b16 %v653, %v649
    %v990 = vpack.c.b16 %v654, %v650
    %v991 = vpack.c.b16 %v659, %v655
    %v992 = vpack.c.b16 %v660, %v656
    %v993 = vpack.c.b16 %v661, %v657
    %v994 = vpack.c.b16 %v662, %v658
    %v995 = vpack.c.b16 %v667, %v663
    %v996 = vpack.c.b16 %v668, %v664
    %v997 = vpack.c.b16 %v669, %v665
    %v998 = vpack.c.b16 %v670, %v666
    %v999 = vpack.c.b16 %v675, %v671
    %v1000 = vpack.c.b16 %v676, %v672
    %v1001 = vpack.c.b16 %v677, %v673
    %v1002 = vpack.c.b16 %v678, %v674
    %v1003 = vpack.c.b16 %v683, %v679
    %v1004 = vpack.c.b16 %v684, %v680
    %v1005 = vpack.c.b16 %v685, %v681
    %v1006 = vpack.c.b16 %v686, %v682
    %v1007 = vpack.c.b16 %v691, %v687
    %v1008 = vpack.c.b16 %v692, %v688
    %v1009 = vpack.c.b16 %v693, %v689
    %v1010 = vpack.c.b16 %v694, %v690
    %v1011 = vpack.c.b16 %v699, %v695
    %v1012 = vpack.c.b16 %v700, %v696
    %v1013 = vpack.c.b16 %v701, %v697
    %v1014 = vpack.c.b16 %v702, %v698
    %v1015 = vpack.c.b16 %v707, %v703
    %v1016 = vpack.c.b16 %v708, %v704
    %v1017 = vpack.c.b16 %v709, %v705
    %v1018 = vpack.c.b16 %v710, %v706
    %v1019 = vpack.c.b16 %v715, %v711
    %v1020 = vpack.c.b16 %v716, %v712
    %v1021 = vpack.c.b16 %v717, %v713
    %v1022 = vpack.c.b16 %v718, %v714
    %v1023 = vpack.c.b16 %v723, %v719
    %v1024 = vpack.c.b16 %v724, %v720
    %v1025 = vpack.c.b16 %v725, %v721
    %v1026 = vpack.c.b16 %v726, %v722
    %v1027 = vpack.c.b16 %v731, %v727
    %v1028 = vpack.c.b16 %v732, %v728
    %v1029 = vpack.c.b16 %v733, %v729
    %v1030 = vpack.c.b16 %v734, %v730
    %v1031 = vpack.c.b16 %v739, %v735
    %v1032 = vpack.c.b16 %v740, %v736
    %v1033 = vpack.c.b16 %v741, %v737
    %v1034 = vpack.c.b16 %v742, %v738
    %v1035 = vpack.c.b16 %v747, %v743
    %v1036 = vpack.c.b16 %v748, %v744
    %v1037 = vpack.c.b16 %v749, %v745
    %v1038 = vpack.c.b16 %v750, %v746
    %v1039 = vpack.c.b16 %v755, %v751
    %v1040 = vpack.c.b16 %v756, %v752
    %v1041 = vpack.c.b16 %v757, %v753
    %v1042 = vpack.c.b16 %v758, %v754
    %v1043 = vpack.c.b16 %v763, %v759
    %v1044 = vpack.c.b16 %v764, %v760
    %v1045 = vpack.c.b16 %v765, %v761
    %v1046 = vpack.c.b16 %v766, %v762
    %v1047 = vpack.c.b16 %v771, %v767
    %v1048 = vpack.c.b16 %v772, %v768
    %v1049 = vpack.c.b16 %v773, %v769
    %v1050 = vpack.c.b16 %v774, %v770
    %v1051 = vpack.c.b16 %v779, %v775
    %v1052 = vpack.c.b16 %v780, %v776
    %v1053 = vpack.c.b16 %v781, %v777
    %v1054 = vpack.c.b16 %v782, %v778
    %v1055 = vpack.c.b16 %v787, %v783
    %v1056 = vpack.c.b16 %v788, %v784
    %v1057 = vpack.c.b16 %v789, %v785
    %v1058 = vpack.c.b16 %v790, %v786
    %v1059 = vpack.c.b16 %v795, %v791
    %v1060 = vpack.c.b16 %v796, %v792
    %v1061 = vpack.c.b16 %v797, %v793
    %v1062 = vpack.c.b16 %v798, %v794
    %v1063 = vpack.c.b16 %v803, %v799
    %v1064 = vpack.c.b16 %v804, %v800
    %v1065 = vpack.c.b16 %v805, %v801
    %v1066 = vpack.c.b16 %v806, %v802
    %v1067 = vpack.c.b16 %v811, %v807
    %v1068 = vpack.c.b16 %v812, %v808
    %v1069 = vpack.c.b16 %v813, %v809
    %v1070 = vpack.c.b16 %v814, %v810
    %v1071 = vpack.c.b16 %v819, %v815
    %v1072 = vpack.c.b16 %v820, %v816
    %v1073 = vpack.c.b16 %v821, %v817
    %v1074 = vpack.c.b16 %v822, %v818
    %v1075 = vpack.c.b16 %v827, %v823
    %v1076 = vpack.c.b16 %v828, %v824
    %v1077 = vpack.c.b16 %v829, %v825
    %v1078 = vpack.c.b16 %v830, %v826
    %v1079 = vpack.c.b16 %v835, %v831
    %v1080 = vpack.c.b16 %v836, %v832
    %v1081 = vpack.c.b16 %v837, %v833
    %v1082 = vpack.c.b16 %v838, %v834
    %v1083 = vpack.c.b16 %v843, %v839
    %v1084 = vpack.c.b16 %v844, %v840
    %v1085 = vpack.c.b16 %v845, %v841
    %v1086 = vpack.c.b16 %v846, %v842
    %v1087 = vpack.c.b16 %v851, %v847
    %v1088 = vpack.c.b16 %v852, %v848
    %v1089 = vpack.c.b16 %v853, %v849
    %v1090 = vpack.c.b16 %v854, %v850
    %v1091 = vpack.c.b16 %v859, %v855
    %v1092 = vpack.c.b16 %v860, %v856
    %v1093 = vpack.c.b16 %v861, %v857
    %v1094 = vpack.c.b16 %v862, %v858
    %v1095 = vpack.c.b16 %v867, %v863
    %v1096 = vpack.c.b16 %v868, %v864
    %v1097 = vpack.c.b16 %v869, %v865
    %v1098 = vpack.c.b16 %v870, %v866
    %v1099 = vpack.c.b16 %v875, %v871
    %v1100 = vpack.c.b16 %v876, %v872
    %v1101 = vpack.c.b16 %v877, %v873
    %v1102 = vpack.c.b16 %v878, %v874
    %v1103 = vpack.c.b16 %v883, %v879
    %v1104 = vpack.c.b16 %v884, %v880
    %v1105 = vpack.c.b16 %v885, %v881
    %v1106 = vpack.c.b16 %v886, %v882
    %v1107 = vpack.c.b16 %v891, %v887
    %v1108 = vpack.c.b16 %v892, %v888
    %v1109 = vpack.c.b16 %v893, %v889
    %v1110 = vpack.c.b16 %v894, %v890
    %v1111 = vpack.c.b16 %v899, %v895
    %v1112 = vpack.c.b16 %v900, %v896
    %v1113 = vpack.c.b16 %v901, %v897
    %v1114 = vpack.c.b16 %v902, %v898
    %v1115 = vpack.c.b16 %v907, %v903
    %v1116 = vpack.c.b16 %v908, %v904
    %v1117 = vpack.c.b16 %v909, %v905
    %v1118 = vpack.c.b16 %v910, %v906
    %v1119 = vpack.c.b16 %v915, %v911
    %v1120 = vpack.c.b16 %v916, %v912
    %v1121 = vpack.c.b16 %v917, %v913
    %v1122 = vpack.c.b16 %v918, %v914
    %v1123 = vpack.c.b16 %v923, %v919
    %v1124 = vpack.c.b16 %v924, %v920
    %v1125 = vpack.c.b16 %v925, %v921
    %v1126 = vpack.c.b16 %v926, %v922
    %v1127 = vpack.c.b16 %v931, %v927
    %v1128 = vpack.c.b16 %v932, %v928
    %v1129 = vpack.c.b16 %v933, %v929
    %v1130 = vpack.c.b16 %v934, %v930
    %vm1327 = vcmask 130048
    %v1329 = vsel %vm1327, %v128, 0
    %1331 = vmatprep.subr.bf16.mxu0 %v936
    %1332 = vmatpush1.bf16.msra.mxu0 %v935
    %1333 = vmatprep.subr.bf16.mxu0 %v940
    %1334 = vmatpush1.bf16.msra.mxu0 %v939
    %1335 = vmatprep.subr.bf16.mxu0 %v944
    %1336 = vmatpush1.bf16.msra.mxu0 %v943
    %1337 = vmatprep.subr.bf16.mxu0 %v948
    %1338 = vmatpush1.bf16.msra.mxu0 %v947
    %1339 = vmatprep.subr.bf16.mxu0 %v952
    %1340 = vmatpush1.bf16.msra.mxu0 %v951
    %1341 = vmatprep.subr.bf16.mxu0 %v956
    %1342 = vmatpush1.bf16.msra.mxu0 %v955
    %1343 = vmatprep.subr.bf16.mxu0 %v960
    %1344 = vmatpush1.bf16.msra.mxu0 %v959
    %1345 = vmatprep.subr.bf16.mxu0 %v964
    %1346 = vmatpush1.bf16.msra.mxu0 %v963
    %1347 = vmatprep.subr.bf16.mxu0 %v968
    %1348 = vmatpush1.bf16.msra.mxu0 %v967
    %1349 = vmatprep.subr.bf16.mxu0 %v972
    %1350 = vmatpush1.bf16.msra.mxu0 %v971
    %1351 = vmatprep.subr.bf16.mxu0 %v976
    %1352 = vmatpush1.bf16.msra.mxu0 %v975
    %1353 = vmatprep.subr.bf16.mxu0 %v980
    %1354 = vmatpush1.bf16.msra.mxu0 %v979
    %1355 = vmatprep.subr.bf16.mxu0 %v984
    %1356 = vmatpush1.bf16.msra.mxu0 %v983
    %1357 = vmatprep.subr.bf16.mxu0 %v988
    %1358 = vmatpush1.bf16.msra.mxu0 %v987
    %1359 = vmatprep.subr.bf16.mxu0 %v992
    %1360 = vmatpush1.bf16.msra.mxu0 %v991
    %1361 = vmatprep.subr.bf16.mxu0 %v996
    %1362 = vmatpush1.bf16.msra.mxu0 %v995
    %1363 = vmatprep.mubr.bf16.mxu0 %v123
    %1364 = vmatmul.mubr.bf16.gmra.mrb[0].mxu0 %v122
    %v1365 = vpop.f32.mrb[0].mxu0
    %v1366 = vadd.f32 %v330, %v1365
    %v1367 = vpop.f32.mrb[0].mxu0
    %v1368 = vadd.f32 %v334, %v1367
    %v1369 = vpop.f32.mrb[0].mxu0
    %v1370 = vpop.f32.mrb[0].mxu0
    %1371 = vdwg.mxu0
    %1372 = vmatprep.subr.bf16.mxu0 %v1000
    %1373 = vmatpush1.bf16.msra.mxu0 %v999
    %1374 = vmatprep.subr.bf16.mxu0 %v1004
    %1375 = vmatpush1.bf16.msra.mxu0 %v1003
    %1376 = vmatprep.subr.bf16.mxu0 %v1008
    %1377 = vmatpush1.bf16.msra.mxu0 %v1007
    %1378 = vmatprep.subr.bf16.mxu0 %v1012
    %1379 = vmatpush1.bf16.msra.mxu0 %v1011
    %1380 = vmatprep.subr.bf16.mxu0 %v1016
    %1381 = vmatpush1.bf16.msra.mxu0 %v1015
    %1382 = vmatprep.subr.bf16.mxu0 %v1020
    %1383 = vmatpush1.bf16.msra.mxu0 %v1019
    %1384 = vmatprep.subr.bf16.mxu0 %v1024
    %1385 = vmatpush1.bf16.msra.mxu0 %v1023
    %1386 = vmatprep.subr.bf16.mxu0 %v1028
    %1387 = vmatpush1.bf16.msra.mxu0 %v1027
    %1388 = vmatprep.subr.bf16.mxu0 %v1032
    %1389 = vmatpush1.bf16.msra.mxu0 %v1031
    %1390 = vmatprep.subr.bf16.mxu0 %v1036
    %1391 = vmatpush1.bf16.msra.mxu0 %v1035
    %1392 = vmatprep.subr.bf16.mxu0 %v1040
    %1393 = vmatpush1.bf16.msra.mxu0 %v1039
    %1394 = vmatprep.subr.bf16.mxu0 %v1044
    %1395 = vmatpush1.bf16.msra.mxu0 %v1043
    %1396 = vmatprep.subr.bf16.mxu0 %v1048
    %1397 = vmatpush1.bf16.msra.mxu0 %v1047
    %1398 = vmatprep.subr.bf16.mxu0 %v1052
    %1399 = vmatpush1.bf16.msra.mxu0 %v1051
    %1400 = vmatprep.subr.bf16.mxu0 %v1056
    %1401 = vmatpush1.bf16.msra.mxu0 %v1055
    %1402 = vmatprep.subr.bf16.mxu0 %v1060
    %1403 = vmatpush1.bf16.msra.mxu0 %v1059
    %1404 = vmatprep.mubr.bf16.mxu0 %v125
    %1405 = vmatmul.mubr.bf16.gmra.mrb[0].mxu0 %v124
    %v1406 = vpop.f32.mrb[0].mxu0
    %v1407 = vadd.f32 %v1366, %v1406
    %v1408 = vpop.f32.mrb[0].mxu0
    %v1409 = vadd.f32 %v1368, %v1408
    %v1410 = vpop.f32.mrb[0].mxu0
    %v1411 = vpop.f32.mrb[0].mxu0
    %1412 = vdwg.mxu0
    %1413 = vmatprep.subr.bf16.mxu0 %v1064
    %1414 = vmatpush1.bf16.msra.mxu0 %v1063
    %1415 = vmatprep.subr.bf16.mxu0 %v1068
    %1416 = vmatpush1.bf16.msra.mxu0 %v1067
    %1417 = vmatprep.subr.bf16.mxu0 %v1072
    %1418 = vmatpush1.bf16.msra.mxu0 %v1071
    %1419 = vmatprep.subr.bf16.mxu0 %v1076
    %1420 = vmatpush1.bf16.msra.mxu0 %v1075
    %1421 = vmatprep.subr.bf16.mxu0 %v1080
    %1422 = vmatpush1.bf16.msra.mxu0 %v1079
    %1423 = vmatprep.subr.bf16.mxu0 %v1084
    %1424 = vmatpush1.bf16.msra.mxu0 %v1083
    %1425 = vmatprep.subr.bf16.mxu0 %v1088
    %1426 = vmatpush1.bf16.msra.mxu0 %v1087
    %1427 = vmatprep.subr.bf16.mxu0 %v1092
    %1428 = vmatpush1.bf16.msra.mxu0 %v1091
    %1429 = vmatprep.subr.bf16.mxu0 %v1096
    %1430 = vmatpush1.bf16.msra.mxu0 %v1095
    %1431 = vmatprep.subr.bf16.mxu0 %v1100
    %1432 = vmatpush1.bf16.msra.mxu0 %v1099
    %1433 = vmatprep.subr.bf16.mxu0 %v1104
    %1434 = vmatpush1.bf16.msra.mxu0 %v1103
    %1435 = vmatprep.subr.bf16.mxu0 %v1108
    %1436 = vmatpush1.bf16.msra.mxu0 %v1107
    %1437 = vmatprep.subr.bf16.mxu0 %v1112
    %1438 = vmatpush1.bf16.msra.mxu0 %v1111
    %1439 = vmatprep.subr.bf16.mxu0 %v1116
    %1440 = vmatpush1.bf16.msra.mxu0 %v1115
    %1441 = vmatprep.subr.bf16.mxu0 %v1120
    %1442 = vmatpush1.bf16.msra.mxu0 %v1119
    %1443 = vmatprep.subr.bf16.mxu0 %v1124
    %1444 = vmatpush1.bf16.msra.mxu0 %v1123
    %1445 = vmatprep.mubr.bf16.mxu0 %v127
    %1446 = vmatmul.mubr.bf16.gmra.mrb[0].mxu0 %v126
    %v1447 = vpop.f32.mrb[0].mxu0
    %v1448 = vadd.f32 %v1407, %v1447
    %v1449 = vpop.f32.mrb[0].mxu0
    %v1450 = vadd.f32 %v1409, %v1449
    %v1451 = vpop.f32.mrb[0].mxu0
    %v1452 = vpop.f32.mrb[0].mxu0
    %1453 = vdwg.mxu0
    %1454 = vmatprep.subr.bf16.mxu0 %v1128
    %1455 = vmatpush1.bf16.msra.mxu0 %v1127
    %1456 = vmatprep.subr.bf16.mxu0 0
    %1457 = vmatpush1.bf16.msra.mxu0 0
    %1458 = vmatprep.subr.bf16.mxu0 0
    %1459 = vmatpush1.bf16.msra.mxu0 0
    %1460 = vmatprep.subr.bf16.mxu0 0
    %1461 = vmatpush1.bf16.msra.mxu0 0
    %1462 = vmatprep.subr.bf16.mxu0 0
    %1463 = vmatpush1.bf16.msra.mxu0 0
    %1464 = vmatprep.subr.bf16.mxu0 0
    %1465 = vmatpush1.bf16.msra.mxu0 0
    %1466 = vmatprep.subr.bf16.mxu0 0
    %1467 = vmatpush1.bf16.msra.mxu0 0
    %1468 = vmatprep.subr.bf16.mxu0 0
    %1469 = vmatpush1.bf16.msra.mxu0 0
    %1470 = vmatprep.subr.bf16.mxu0 0
    %1471 = vmatpush1.bf16.msra.mxu0 0
    %1472 = vmatprep.subr.bf16.mxu0 0
    %1473 = vmatpush1.bf16.msra.mxu0 0
    %1474 = vmatprep.subr.bf16.mxu0 0
    %1475 = vmatpush1.bf16.msra.mxu0 0
    %1476 = vmatprep.subr.bf16.mxu0 0
    %1477 = vmatpush1.bf16.msra.mxu0 0
    %1478 = vmatprep.subr.bf16.mxu0 0
    %1479 = vmatpush1.bf16.msra.mxu0 0
    %1480 = vmatprep.subr.bf16.mxu0 0
    %1481 = vmatpush1.bf16.msra.mxu0 0
    %1482 = vmatprep.subr.bf16.mxu0 0
    %1483 = vmatpush1.bf16.msra.mxu0 0
    %1484 = vmatprep.subr.bf16.mxu0 0
    %1485 = vmatpush1.bf16.msra.mxu0 0
    %1486 = vmatprep.mubr.bf16.mxu0 0
    %1487 = vmatmul.mubr.bf16.gmra.mrb[0].mxu0 %v1329
    %v1488 = vpop.f32.mrb[0].mxu0
    %v1489 = vadd.f32 %v1448, %v1488
    %v1490 = vpop.f32.mrb[0].mxu0
    %v1491 = vadd.f32 %v1450, %v1490
    %v1492 = vpop.f32.mrb[0].mxu0
    %v1493 = vpop.f32.mrb[0].mxu0
    %1494 = vdwg.mxu0
    %1495 = vmatprep.subr.bf16.mxu0 %v938
    %1496 = vmatpush1.bf16.msra.mxu0 %v937
    %1497 = vmatprep.subr.bf16.mxu0 %v942
    %1498 = vmatpush1.bf16.msra.mxu0 %v941
    %1499 = vmatprep.subr.bf16.mxu0 %v946
    %1500 = vmatpush1.bf16.msra.mxu0 %v945
    %1501 = vmatprep.subr.bf16.mxu0 %v950
    %1502 = vmatpush1.bf16.msra.mxu0 %v949
    %1503 = vmatprep.subr.bf16.mxu0 %v954
    %1504 = vmatpush1.bf16.msra.mxu0 %v953
    %1505 = vmatprep.subr.bf16.mxu0 %v958
    %1506 = vmatpush1.bf16.msra.mxu0 %v957
    %1507 = vmatprep.subr.bf16.mxu0 %v962
    %1508 = vmatpush1.bf16.msra.mxu0 %v961
    %1509 = vmatprep.subr.bf16.mxu0 %v966
    %1510 = vmatpush1.bf16.msra.mxu0 %v965
    %1511 = vmatprep.subr.bf16.mxu0 %v970
    %1512 = vmatpush1.bf16.msra.mxu0 %v969
    %1513 = vmatprep.subr.bf16.mxu0 %v974
    %1514 = vmatpush1.bf16.msra.mxu0 %v973
    %1515 = vmatprep.subr.bf16.mxu0 %v978
    %1516 = vmatpush1.bf16.msra.mxu0 %v977
    %1517 = vmatprep.subr.bf16.mxu0 %v982
    %1518 = vmatpush1.bf16.msra.mxu0 %v981
    %1519 = vmatprep.subr.bf16.mxu0 %v986
    %1520 = vmatpush1.bf16.msra.mxu0 %v985
    %1521 = vmatprep.subr.bf16.mxu0 %v990
    %1522 = vmatpush1.bf16.msra.mxu0 %v989
    %1523 = vmatprep.subr.bf16.mxu0 %v994
    %1524 = vmatpush1.bf16.msra.mxu0 %v993
    %1525 = vmatprep.subr.bf16.mxu0 %v998
    %1526 = vmatpush1.bf16.msra.mxu0 %v997
    %1527 = vmatprep.mubr.bf16.mxu0 %v123
    %1528 = vmatmul.mubr.bf16.gmra.mrb[0].mxu0 %v122
    %v1529 = vpop.f32.mrb[0].mxu0
    %v1530 = vadd.f32 %v338, %v1529
    %v1531 = vpop.f32.mrb[0].mxu0
    %v1532 = vadd.f32 %v342, %v1531
    %v1533 = vpop.f32.mrb[0].mxu0
    %v1534 = vpop.f32.mrb[0].mxu0
    %1535 = vdwg.mxu0
    %1536 = vmatprep.subr.bf16.mxu0 %v1002
    %1537 = vmatpush1.bf16.msra.mxu0 %v1001
    %1538 = vmatprep.subr.bf16.mxu0 %v1006
    %1539 = vmatpush1.bf16.msra.mxu0 %v1005
    %1540 = vmatprep.subr.bf16.mxu0 %v1010
    %1541 = vmatpush1.bf16.msra.mxu0 %v1009
    %1542 = vmatprep.subr.bf16.mxu0 %v1014
    %1543 = vmatpush1.bf16.msra.mxu0 %v1013
    %1544 = vmatprep.subr.bf16.mxu0 %v1018
    %1545 = vmatpush1.bf16.msra.mxu0 %v1017
    %1546 = vmatprep.subr.bf16.mxu0 %v1022
    %1547 = vmatpush1.bf16.msra.mxu0 %v1021
    %1548 = vmatprep.subr.bf16.mxu0 %v1026
    %1549 = vmatpush1.bf16.msra.mxu0 %v1025
    %1550 = vmatprep.subr.bf16.mxu0 %v1030
    %1551 = vmatpush1.bf16.msra.mxu0 %v1029
    %1552 = vmatprep.subr.bf16.mxu0 %v1034
    %1553 = vmatpush1.bf16.msra.mxu0 %v1033
    %1554 = vmatprep.subr.bf16.mxu0 %v1038
    %1555 = vmatpush1.bf16.msra.mxu0 %v1037
    %1556 = vmatprep.subr.bf16.mxu0 %v1042
    %1557 = vmatpush1.bf16.msra.mxu0 %v1041
    %1558 = vmatprep.subr.bf16.mxu0 %v1046
    %1559 = vmatpush1.bf16.msra.mxu0 %v1045
    %1560 = vmatprep.subr.bf16.mxu0 %v1050
    %1561 = vmatpush1.bf16.msra.mxu0 %v1049
    %1562 = vmatprep.subr.bf16.mxu0 %v1054
    %1563 = vmatpush1.bf16.msra.mxu0 %v1053
    %1564 = vmatprep.subr.bf16.mxu0 %v1058
    %1565 = vmatpush1.bf16.msra.mxu0 %v1057
    %1566 = vmatprep.subr.bf16.mxu0 %v1062
    %1567 = vmatpush1.bf16.msra.mxu0 %v1061
    %1568 = vmatprep.mubr.bf16.mxu0 %v125
    %1569 = vmatmul.mubr.bf16.gmra.mrb[0].mxu0 %v124
    %v1570 = vpop.f32.mrb[0].mxu0
    %v1571 = vadd.f32 %v1530, %v1570
    %v1572 = vpop.f32.mrb[0].mxu0
    %v1573 = vadd.f32 %v1532, %v1572
    %v1574 = vpop.f32.mrb[0].mxu0
    %v1575 = vpop.f32.mrb[0].mxu0
    %1576 = vdwg.mxu0
    %1577 = vmatprep.subr.bf16.mxu0 %v1066
    %1578 = vmatpush1.bf16.msra.mxu0 %v1065
    %1579 = vmatprep.subr.bf16.mxu0 %v1070
    %1580 = vmatpush1.bf16.msra.mxu0 %v1069
    %1581 = vmatprep.subr.bf16.mxu0 %v1074
    %1582 = vmatpush1.bf16.msra.mxu0 %v1073
    %1583 = vmatprep.subr.bf16.mxu0 %v1078
    %1584 = vmatpush1.bf16.msra.mxu0 %v1077
    %1585 = vmatprep.subr.bf16.mxu0 %v1082
    %1586 = vmatpush1.bf16.msra.mxu0 %v1081
    %1587 = vmatprep.subr.bf16.mxu0 %v1086
    %1588 = vmatpush1.bf16.msra.mxu0 %v1085
    %1589 = vmatprep.subr.bf16.mxu0 %v1090
    %1590 = vmatpush1.bf16.msra.mxu0 %v1089
    %1591 = vmatprep.subr.bf16.mxu0 %v1094
    %1592 = vmatpush1.bf16.msra.mxu0 %v1093
    %1593 = vmatprep.subr.bf16.mxu0 %v1098
    %1594 = vmatpush1.bf16.msra.mxu0 %v1097
    %1595 = vmatprep.subr.bf16.mxu0 %v1102
    %1596 = vmatpush1.bf16.msra.mxu0 %v1101
    %1597 = vmatprep.subr.bf16.mxu0 %v1106
    %1598 = vmatpush1.bf16.msra.mxu0 %v1105
    %1599 = vmatprep.subr.bf16.mxu0 %v1110
    %1600 = vmatpush1.bf16.msra.mxu0 %v1109
    %1601 = vmatprep.subr.bf16.mxu0 %v1114
    %1602 = vmatpush1.bf16.msra.mxu0 %v1113
    %1603 = vmatprep.subr.bf16.mxu0 %v1118
    %1604 = vmatpush1.bf16.msra.mxu0 %v1117
    %1605 = vmatprep.subr.bf16.mxu0 %v1122
    %1606 = vmatpush1.bf16.msra.mxu0 %v1121
    %1607 = vmatprep.subr.bf16.mxu0 %v1126
    %1608 = vmatpush1.bf16.msra.mxu0 %v1125
    %1609 = vmatprep.mubr.bf16.mxu0 %v127
    %1610 = vmatmul.mubr.bf16.gmra.mrb[0].mxu0 %v126
    %v1611 = vpop.f32.mrb[0].mxu0
    %v1612 = vadd.f32 %v1571, %v1611
    %v1613 = vpop.f32.mrb[0].mxu0
    %v1614 = vadd.f32 %v1573, %v1613
    %v1615 = vpop.f32.mrb[0].mxu0
    %v1616 = vpop.f32.mrb[0].mxu0
    %1617 = vdwg.mxu0
    %1618 = vmatprep.subr.bf16.mxu0 %v1130
    %1619 = vmatpush1.bf16.msra.mxu0 %v1129
    %1620 = vmatprep.subr.bf16.mxu0 0
    %1621 = vmatpush1.bf16.msra.mxu0 0
    %1622 = vmatprep.subr.bf16.mxu0 0
    %1623 = vmatpush1.bf16.msra.mxu0 0
    %1624 = vmatprep.subr.bf16.mxu0 0
    %1625 = vmatpush1.bf16.msra.mxu0 0
    %1626 = vmatprep.subr.bf16.mxu0 0
    %1627 = vmatpush1.bf16.msra.mxu0 0
    %1628 = vmatprep.subr.bf16.mxu0 0
    %1629 = vmatpush1.bf16.msra.mxu0 0
    %1630 = vmatprep.subr.bf16.mxu0 0
    %1631 = vmatpush1.bf16.msra.mxu0 0
    %1632 = vmatprep.subr.bf16.mxu0 0
    %1633 = vmatpush1.bf16.msra.mxu0 0
    %1634 = vmatprep.subr.bf16.mxu0 0
    %1635 = vmatpush1.bf16.msra.mxu0 0
    %1636 = vmatprep.subr.bf16.mxu0 0
    %1637 = vmatpush1.bf16.msra.mxu0 0
    %1638 = vmatprep.subr.bf16.mxu0 0
    %1639 = vmatpush1.bf16.msra.mxu0 0
    %1640 = vmatprep.subr.bf16.mxu0 0
    %1641 = vmatpush1.bf16.msra.mxu0 0
    %1642 = vmatprep.subr.bf16.mxu0 0
    %1643 = vmatpush1.bf16.msra.mxu0 0
    %1644 = vmatprep.subr.bf16.mxu0 0
    %1645 = vmatpush1.bf16.msra.mxu0 0
    %1646 = vmatprep.subr.bf16.mxu0 0
    %1647 = vmatpush1.bf16.msra.mxu0 0
    %1648 = vmatprep.subr.bf16.mxu0 0
    %1649 = vmatpush1.bf16.msra.mxu0 0
    %1650 = vmatprep.mubr.bf16.mxu0 0
    %1651 = vmatmul.mubr.bf16.gmra.mrb[0].mxu0 %v1329
    %v1652 = vpop.f32.mrb[0].mxu0
    %v1653 = vadd.f32 %v1612, %v1652
    %v1654 = vpop.f32.mrb[0].mxu0
    %v1655 = vadd.f32 %v1614, %v1654
    %v1656 = vpop.f32.mrb[0].mxu0
    %v1657 = vpop.f32.mrb[0].mxu0
    %1658 = vdwg.mxu0
    %v1659 = vmax.f32 %v1489, 0.0
    %v1660 = vmax.f32 %v1491, 0.0
    %v1661 = vmax.f32 %v1653, 0.0
    %v1662 = vmax.f32 %v1655, 0.0
    %v1663 = vpack.c.bf16 %v1659, %v1659
    %v1664 = vpack.c.bf16 %v1660, %v1660
    %v1665 = vpack.c.bf16 %v1661, %v1661
    %v1666 = vpack.c.bf16 %v1662, %v1662
    %v1667 = vld [vmem:[%s3] sm:$0xf]
    %v1668 = vld [vmem:[%s3 + $0x4] sm:$0xf]
    %v1669 = vld [vmem:[%s3 + $0x8] sm:$0xf]
    %v1670 = vld [vmem:[%s3 + $0xc] sm:$0xf]
    %v1671 = vld [vmem:[%s3 + $0x10] sm:$0xf]
    %v1672 = vld [vmem:[%s3 + $0x14] sm:$0xf]
    %v1673 = vld [vmem:[%s3 + $0x18] sm:$0xf]
    %v1674 = vld [vmem:[%s3 + $0x1c] sm:$0xf]
    %v1675 = vld [vmem:[%s3 + $0x20] sm:$0xf]
    %v1676 = vld [vmem:[%s3 + $0x24] sm:$0xf]
    %v1677 = vld [vmem:[%s3 + $0x28] sm:$0xf]
    %v1678 = vld [vmem:[%s3 + $0x2c] sm:$0xf]
    %v1679 = vld [vmem:[%s3 + $0x30] sm:$0xf]
    %v1680 = vld [vmem:[%s3 + $0x34] sm:$0xf]
    %v1681 = vld [vmem:[%s3 + $0x38] sm:$0xf]
    %v1682 = vld [vmem:[%s3 + $0x3c] sm:$0xf]
    %v1683 = vld [vmem:[%s3 + $0x40] sm:$0xf]
    %v1684 = vld [vmem:[%s3 + $0x44] sm:$0xf]
    %v1685 = vld [vmem:[%s3 + $0x48] sm:$0xf]
    %v1686 = vld [vmem:[%s3 + $0x4c] sm:$0xf]
    %v1687 = vld [vmem:[%s3 + $0x50] sm:$0xf]
    %v1688 = vld [vmem:[%s3 + $0x54] sm:$0xf]
    %v1689 = vld [vmem:[%s3 + $0x58] sm:$0xf]
    %v1690 = vld [vmem:[%s3 + $0x5c] sm:$0xf]
    %v1691 = vld [vmem:[%s3 + $0x60] sm:$0xf]
    %v1692 = vld [vmem:[%s3 + $0x64] sm:$0xf]
    %v1693 = vld [vmem:[%s3 + $0x68] sm:$0xf]
    %v1694 = vld [vmem:[%s3 + $0x6c] sm:$0xf]
    %v1695 = vld [vmem:[%s3 + $0x70] sm:$0xf]
    %v1696 = vld [vmem:[%s3 + $0x74] sm:$0xf]
    %v1697 = vld [vmem:[%s3 + $0x78] sm:$0xf]
    %v1698 = vld [vmem:[%s3 + $0x7c] sm:$0xf]
    %v1699 = vld [vmem:[%s3 + $0x80] sm:$0xf]
    %v1700 = vld [vmem:[%s3 + $0x84] sm:$0xf]
    %v1701 = vld [vmem:[%s3 + $0x88] sm:$0xf]
    %v1702 = vld [vmem:[%s3 + $0x8c] sm:$0xf]
    %v1703 = vld [vmem:[%s3 + $0x90] sm:$0xf]
    %v1704 = vld [vmem:[%s3 + $0x94] sm:$0xf]
    %v1705 = vld [vmem:[%s3 + $0x98] sm:$0xf]
    %v1706 = vld [vmem:[%s3 + $0x9c] sm:$0xf]
    %v1707 = vld [vmem:[%s3 + $0xa0] sm:$0xf]
    %v1708 = vld [vmem:[%s3 + $0xa4] sm:$0xf]
    %v1709 = vld [vmem:[%s3 + $0xa8] sm:$0xf]
    %v1710 = vld [vmem:[%s3 + $0xac] sm:$0xf]
    %v1711 = vld [vmem:[%s3 + $0xb0] sm:$0xf]
    %v1712 = vld [vmem:[%s3 + $0xb4] sm:$0xf]
    %v1713 = vld [vmem:[%s3 + $0xb8] sm:$0xf]
    %v1714 = vld [vmem:[%s3 + $0xbc] sm:$0xf]
    %v1715 = vld [vmem:[%s3 + $0xc0] sm:$0xf]
    %v1716 = vld [vmem:[%s3 + $0xc4] sm:$0xf]
    %v1717 = vld [vmem:[%s3 + $0xc8] sm:$0xf]
    %v1718 = vld [vmem:[%s3 + $0xcc] sm:$0xf]
    %v1719 = vld [vmem:[%s3 + $0xd0] sm:$0xf]
    %v1720 = vld [vmem:[%s3 + $0xd4] sm:$0xf]
    %v1721 = vld [vmem:[%s3 + $0xd8] sm:$0xf]
    %v1722 = vld [vmem:[%s3 + $0xdc] sm:$0xf]
    %v1723 = vld [vmem:[%s3 + $0xe0] sm:$0xf]
    %v1724 = vld [vmem:[%s3 + $0xe4] sm:$0xf]
    %v1725 = vld [vmem:[%s3 + $0xe8] sm:$0xf]
    %v1726 = vld [vmem:[%s3 + $0xec] sm:$0xf]
    %v1727 = vld [vmem:[%s3 + $0xf0] sm:$0xf]
    %v1728 = vld [vmem:[%s3 + $0xf4] sm:$0xf]
    %v1729 = vld [vmem:[%s3 + $0xf8] sm:$0xf]
    %v1730 = vld [vmem:[%s3 + $0xfc] sm:$0xf]
    %v1731 = vld [vmem:[%s4] sm:$0x1]
    %v1733 = vlaneseq
    %v1734 = vshrl.u32 %v1733, 7
    %v1735 = vsub.s32 0, %v1734
    %v1736 = vrot.slane %v1731, %v1735
    %v1802 = vunpack.c.l.b16 %v1667
    %v1803 = vunpack.c.l.b16 %v1668
    %v1804 = vunpack.c.l.b16 %v1669
    %v1805 = vunpack.c.l.b16 %v1670
    %v1806 = vunpack.c.l.b16 %v1671
    %v1807 = vunpack.c.l.b16 %v1672
    %v1808 = vunpack.c.l.b16 %v1673
    %v1809 = vunpack.c.l.b16 %v1674
    %v1810 = vunpack.c.l.b16 %v1675
    %v1811 = vunpack.c.l.b16 %v1676
    %v1812 = vunpack.c.l.b16 %v1677
    %v1813 = vunpack.c.l.b16 %v1678
    %v1814 = vunpack.c.l.b16 %v1679
    %v1815 = vunpack.c.l.b16 %v1680
    %v1816 = vunpack.c.l.b16 %v1681
    %v1817 = vunpack.c.l.b16 %v1682
    %v1818 = vunpack.c.l.b16 %v1683
    %v1819 = vunpack.c.l.b16 %v1684
    %v1820 = vunpack.c.l.b16 %v1685
    %v1821 = vunpack.c.l.b16 %v1686
    %v1822 = vunpack.c.l.b16 %v1687
    %v1823 = vunpack.c.l.b16 %v1688
    %v1824 = vunpack.c.l.b16 %v1689
    %v1825 = vunpack.c.l.b16 %v1690
    %v1826 = vunpack.c.l.b16 %v1691
    %v1827 = vunpack.c.l.b16 %v1692
    %v1828 = vunpack.c.l.b16 %v1693
    %v1829 = vunpack.c.l.b16 %v1694
    %v1830 = vunpack.c.l.b16 %v1695
    %v1831 = vunpack.c.l.b16 %v1696
    %v1832 = vunpack.c.l.b16 %v1697
    %v1833 = vunpack.c.l.b16 %v1698
    %v1834 = vunpack.c.l.b16 %v1699
    %v1835 = vunpack.c.l.b16 %v1700
    %v1836 = vunpack.c.l.b16 %v1701
    %v1837 = vunpack.c.l.b16 %v1702
    %v1838 = vunpack.c.l.b16 %v1703
    %v1839 = vunpack.c.l.b16 %v1704
    %v1840 = vunpack.c.l.b16 %v1705
    %v1841 = vunpack.c.l.b16 %v1706
    %v1842 = vunpack.c.l.b16 %v1707
    %v1843 = vunpack.c.l.b16 %v1708
    %v1844 = vunpack.c.l.b16 %v1709
    %v1845 = vunpack.c.l.b16 %v1710
    %v1846 = vunpack.c.l.b16 %v1711
    %v1847 = vunpack.c.l.b16 %v1712
    %v1848 = vunpack.c.l.b16 %v1713
    %v1849 = vunpack.c.l.b16 %v1714
    %v1850 = vunpack.c.l.b16 %v1715
    %v1851 = vunpack.c.l.b16 %v1716
    %v1852 = vunpack.c.l.b16 %v1717
    %v1853 = vunpack.c.l.b16 %v1718
    %v1854 = vunpack.c.l.b16 %v1719
    %v1855 = vunpack.c.l.b16 %v1720
    %v1856 = vunpack.c.l.b16 %v1721
    %v1857 = vunpack.c.l.b16 %v1722
    %v1858 = vunpack.c.l.b16 %v1723
    %v1859 = vunpack.c.l.b16 %v1724
    %v1860 = vunpack.c.l.b16 %v1725
    %v1861 = vunpack.c.l.b16 %v1726
    %v1862 = vunpack.c.l.b16 %v1727
    %v1863 = vunpack.c.l.b16 %v1728
    %v1864 = vunpack.c.l.b16 %v1729
    %v1865 = vunpack.c.l.b16 %v1730
    %v1866 = vpack.c.b16 %v1803, %v1802
    %v1867 = vpack.c.b16 %v1805, %v1804
    %v1868 = vpack.c.b16 %v1807, %v1806
    %v1869 = vpack.c.b16 %v1809, %v1808
    %v1870 = vpack.c.b16 %v1811, %v1810
    %v1871 = vpack.c.b16 %v1813, %v1812
    %v1872 = vpack.c.b16 %v1815, %v1814
    %v1873 = vpack.c.b16 %v1817, %v1816
    %v1874 = vpack.c.b16 %v1819, %v1818
    %v1875 = vpack.c.b16 %v1821, %v1820
    %v1876 = vpack.c.b16 %v1823, %v1822
    %v1877 = vpack.c.b16 %v1825, %v1824
    %v1878 = vpack.c.b16 %v1827, %v1826
    %v1879 = vpack.c.b16 %v1829, %v1828
    %v1880 = vpack.c.b16 %v1831, %v1830
    %v1881 = vpack.c.b16 %v1833, %v1832
    %v1882 = vpack.c.b16 %v1835, %v1834
    %v1883 = vpack.c.b16 %v1837, %v1836
    %v1884 = vpack.c.b16 %v1839, %v1838
    %v1885 = vpack.c.b16 %v1841, %v1840
    %v1886 = vpack.c.b16 %v1843, %v1842
    %v1887 = vpack.c.b16 %v1845, %v1844
    %v1888 = vpack.c.b16 %v1847, %v1846
    %v1889 = vpack.c.b16 %v1849, %v1848
    %v1890 = vpack.c.b16 %v1851, %v1850
    %v1891 = vpack.c.b16 %v1853, %v1852
    %v1892 = vpack.c.b16 %v1855, %v1854
    %v1893 = vpack.c.b16 %v1857, %v1856
    %v1894 = vpack.c.b16 %v1859, %v1858
    %v1895 = vpack.c.b16 %v1861, %v1860
    %v1896 = vpack.c.b16 %v1863, %v1862
    %v1897 = vpack.c.b16 %v1865, %v1864
    %1930 = vmatprep.subr.bf16.mxu0 0
    %1931 = vmatpush1.bf16.msra.mxu0 %v1866
    %1932 = vmatprep.subr.bf16.mxu0 0
    %1933 = vmatpush1.bf16.msra.mxu0 %v1867
    %1934 = vmatprep.subr.bf16.mxu0 0
    %1935 = vmatpush1.bf16.msra.mxu0 %v1868
    %1936 = vmatprep.subr.bf16.mxu0 0
    %1937 = vmatpush1.bf16.msra.mxu0 %v1869
    %1938 = vmatprep.subr.bf16.mxu0 0
    %1939 = vmatpush1.bf16.msra.mxu0 %v1870
    %1940 = vmatprep.subr.bf16.mxu0 0
    %1941 = vmatpush1.bf16.msra.mxu0 %v1871
    %1942 = vmatprep.subr.bf16.mxu0 0
    %1943 = vmatpush1.bf16.msra.mxu0 %v1872
    %1944 = vmatprep.subr.bf16.mxu0 0
    %1945 = vmatpush1.bf16.msra.mxu0 %v1873
    %1946 = vmatprep.subr.bf16.mxu0 0
    %1947 = vmatpush1.bf16.msra.mxu0 %v1874
    %1948 = vmatprep.subr.bf16.mxu0 0
    %1949 = vmatpush1.bf16.msra.mxu0 %v1875
    %1950 = vmatprep.subr.bf16.mxu0 0
    %1951 = vmatpush1.bf16.msra.mxu0 %v1876
    %1952 = vmatprep.subr.bf16.mxu0 0
    %1953 = vmatpush1.bf16.msra.mxu0 %v1877
    %1954 = vmatprep.subr.bf16.mxu0 0
    %1955 = vmatpush1.bf16.msra.mxu0 %v1878
    %1956 = vmatprep.subr.bf16.mxu0 0
    %1957 = vmatpush1.bf16.msra.mxu0 %v1879
    %1958 = vmatprep.subr.bf16.mxu0 0
    %1959 = vmatpush1.bf16.msra.mxu0 %v1880
    %1960 = vmatprep.subr.bf16.mxu0 0
    %1961 = vmatpush1.bf16.msra.mxu0 %v1881
    %1962 = vmatprep.mubr.bf16.mxu0 %v1664
    %1963 = vmatmul.mubr.bf16.gmra.mrb[0].mxu0 %v1663
    %v1964 = vpop.f32.mrb[0].mxu0
    %v1965 = vadd.f32 %v1736, %v1964
    %v1966 = vpop.f32.mrb[0].mxu0
    %v1967 = vpop.f32.mrb[0].mxu0
    %v1968 = vpop.f32.mrb[0].mxu0
    %1969 = vdwg.mxu0
    %1970 = vmatprep.subr.bf16.mxu0 0
    %1971 = vmatpush1.bf16.msra.mxu0 %v1882
    %1972 = vmatprep.subr.bf16.mxu0 0
    %1973 = vmatpush1.bf16.msra.mxu0 %v1883
    %1974 = vmatprep.subr.bf16.mxu0 0
    %1975 = vmatpush1.bf16.msra.mxu0 %v1884
    %1976 = vmatprep.subr.bf16.mxu0 0
    %1977 = vmatpush1.bf16.msra.mxu0 %v1885
    %1978 = vmatprep.subr.bf16.mxu0 0
    %1979 = vmatpush1.bf16.msra.mxu0 %v1886
    %1980 = vmatprep.subr.bf16.mxu0 0
    %1981 = vmatpush1.bf16.msra.mxu0 %v1887
    %1982 = vmatprep.subr.bf16.mxu0 0
    %1983 = vmatpush1.bf16.msra.mxu0 %v1888
    %1984 = vmatprep.subr.bf16.mxu0 0
    %1985 = vmatpush1.bf16.msra.mxu0 %v1889
    %1986 = vmatprep.subr.bf16.mxu0 0
    %1987 = vmatpush1.bf16.msra.mxu0 %v1890
    %1988 = vmatprep.subr.bf16.mxu0 0
    %1989 = vmatpush1.bf16.msra.mxu0 %v1891
    %1990 = vmatprep.subr.bf16.mxu0 0
    %1991 = vmatpush1.bf16.msra.mxu0 %v1892
    %1992 = vmatprep.subr.bf16.mxu0 0
    %1993 = vmatpush1.bf16.msra.mxu0 %v1893
    %1994 = vmatprep.subr.bf16.mxu0 0
    %1995 = vmatpush1.bf16.msra.mxu0 %v1894
    %1996 = vmatprep.subr.bf16.mxu0 0
    %1997 = vmatpush1.bf16.msra.mxu0 %v1895
    %1998 = vmatprep.subr.bf16.mxu0 0
    %1999 = vmatpush1.bf16.msra.mxu0 %v1896
    %2000 = vmatprep.subr.bf16.mxu0 0
    %2001 = vmatpush1.bf16.msra.mxu0 %v1897
    %2002 = vmatprep.mubr.bf16.mxu0 %v1666
    %2003 = vmatmul.mubr.bf16.gmra.mrb[0].mxu0 %v1665
    %v2004 = vpop.f32.mrb[0].mxu0
    %v2005 = vadd.f32 %v1965, %v2004
    %v2006 = vpop.f32.mrb[0].mxu0
    %v2007 = vpop.f32.mrb[0].mxu0
    %v2008 = vpop.f32.mrb[0].mxu0
    %2009 = vdwg.mxu0
    %v2010 = vmax.f32 %v2005, 0.0
    %v2011 = vpack.c.bf16 %v2010, %v2010
    %v2012 = vld [vmem:[%s5] sm:$0xf]
    %v2013 = vld [vmem:[%s5 + $0x4] sm:$0xf]
    %v2014 = vld [vmem:[%s5 + $0x8] sm:$0xf]
    %v2015 = vld [vmem:[%s5 + $0xc] sm:$0xf]
    %v2016 = vld [vmem:[%s5 + $0x10] sm:$0xf]
    %v2017 = vld [vmem:[%s5 + $0x14] sm:$0xf]
    %v2018 = vld [vmem:[%s5 + $0x18] sm:$0xf]
    %v2019 = vld [vmem:[%s5 + $0x1c] sm:$0xf]
    %v2020 = vld [vmem:[%s5 + $0x20] sm:$0xf]
    %v2021 = vld [vmem:[%s5 + $0x24] sm:$0xf]
    %v2022 = vld [vmem:[%s5 + $0x28] sm:$0xf]
    %v2023 = vld [vmem:[%s5 + $0x2c] sm:$0xf]
    %v2024 = vld [vmem:[%s5 + $0x30] sm:$0xf]
    %v2025 = vld [vmem:[%s5 + $0x34] sm:$0xf]
    %v2026 = vld [vmem:[%s5 + $0x38] sm:$0xf]
    %v2027 = vld [vmem:[%s5 + $0x3c] sm:$0xf]
    %v2028 = vld [vmem:[%s6] sm:$0x1]
    %v2030 = vlaneseq
    %v2031 = vshrl.u32 %v2030, 7
    %v2032 = vsub.s32 0, %v2031
    %v2033 = vrot.slane %v2028, %v2032
    %v2051 = vunpack.c.l.b16 %v2012
    %v2052 = vunpack.c.l.b16 %v2013
    %v2053 = vunpack.c.l.b16 %v2014
    %v2054 = vunpack.c.l.b16 %v2015
    %v2055 = vunpack.c.l.b16 %v2016
    %v2056 = vunpack.c.l.b16 %v2017
    %v2057 = vunpack.c.l.b16 %v2018
    %v2058 = vunpack.c.l.b16 %v2019
    %v2059 = vunpack.c.l.b16 %v2020
    %v2060 = vunpack.c.l.b16 %v2021
    %v2061 = vunpack.c.l.b16 %v2022
    %v2062 = vunpack.c.l.b16 %v2023
    %v2063 = vunpack.c.l.b16 %v2024
    %v2064 = vunpack.c.l.b16 %v2025
    %v2065 = vunpack.c.l.b16 %v2026
    %v2066 = vunpack.c.l.b16 %v2027
    %v2067 = vpack.c.b16 %v2052, %v2051
    %v2068 = vpack.c.b16 %v2054, %v2053
    %v2069 = vpack.c.b16 %v2056, %v2055
    %v2070 = vpack.c.b16 %v2058, %v2057
    %v2071 = vpack.c.b16 %v2060, %v2059
    %v2072 = vpack.c.b16 %v2062, %v2061
    %v2073 = vpack.c.b16 %v2064, %v2063
    %v2074 = vpack.c.b16 %v2066, %v2065
    %2083 = vmatprep.subr.bf16.mxu0 0
    %2084 = vmatpush1.bf16.msra.mxu0 %v2067
    %2085 = vmatprep.subr.bf16.mxu0 0
    %2086 = vmatpush1.bf16.msra.mxu0 %v2068
    %2087 = vmatprep.subr.bf16.mxu0 0
    %2088 = vmatpush1.bf16.msra.mxu0 %v2069
    %2089 = vmatprep.subr.bf16.mxu0 0
    %2090 = vmatpush1.bf16.msra.mxu0 %v2070
    %2091 = vmatprep.subr.bf16.mxu0 0
    %2092 = vmatpush1.bf16.msra.mxu0 %v2071
    %2093 = vmatprep.subr.bf16.mxu0 0
    %2094 = vmatpush1.bf16.msra.mxu0 %v2072
    %2095 = vmatprep.subr.bf16.mxu0 0
    %2096 = vmatpush1.bf16.msra.mxu0 %v2073
    %2097 = vmatprep.subr.bf16.mxu0 0
    %2098 = vmatpush1.bf16.msra.mxu0 %v2074
    %2099 = vmatprep.subr.bf16.mxu0 0
    %2100 = vmatpush1.bf16.msra.mxu0 0
    %2101 = vmatprep.subr.bf16.mxu0 0
    %2102 = vmatpush1.bf16.msra.mxu0 0
    %2103 = vmatprep.subr.bf16.mxu0 0
    %2104 = vmatpush1.bf16.msra.mxu0 0
    %2105 = vmatprep.subr.bf16.mxu0 0
    %2106 = vmatpush1.bf16.msra.mxu0 0
    %2107 = vmatprep.subr.bf16.mxu0 0
    %2108 = vmatpush1.bf16.msra.mxu0 0
    %2109 = vmatprep.subr.bf16.mxu0 0
    %2110 = vmatpush1.bf16.msra.mxu0 0
    %2111 = vmatprep.subr.bf16.mxu0 0
    %2112 = vmatpush1.bf16.msra.mxu0 0
    %2113 = vmatprep.subr.bf16.mxu0 0
    %2114 = vmatpush1.bf16.msra.mxu0 0
    %2115 = vmatprep.mubr.bf16.mxu0 0
    %2116 = vmatmul.mubr.bf16.gmra.mrb[0].mxu0 %v2011
    %v2117 = vpop.f32.mrb[0].mxu0
    %v2118 = vadd.f32 %v2033, %v2117
    %v2119 = vpop.f32.mrb[0].mxu0
    %v2120 = vpop.f32.mrb[0].mxu0
    %v2121 = vpop.f32.mrb[0].mxu0
    %2122 = vdwg.mxu0
    %vm2123 = vcmask 80896
    %v2124 = vsel %vm2123, %v2118, -inf
    %2125 = vmax.xlane.f32.xlu0 %v2124
    %v2126 = vpop.xlane.xlu0 %2125
    %v2127 = vsub.f32 %v2118, %v2126
    %v2128 = vmul.f32 %v2127, 1.442695
    %v2129 = vpow.pop %v2128
    %v2130 = vsel %vm2123, %v2129, 0.0
    %2131 = vadd.xlane.f32.xlu0 %v2130
    %v2132 = vpop.xlane.xlu0 %2131
    %v2133 = vlog2.pop %v2132
    %v2134 = vmul.f32 %v2133, 0.6931472
    %v2135 = vsub.f32 %v2127, %v2134
    %2136 = vst.msk [vmem:[#allocation2] sm:$0xff] %vm2123, %v2135
    // Predicated region
    $region30: #{mynn_forward.1} parent=1 // pred_check
      _
    $region31: #{mynn_forward.1} parent=1 // pred_check_branch
      %2138 = sbr.rel (0) target = $region33
    $region32: #{mynn_forward.1} parent=1 // pred_region
      %s2140 = ssub.s32 128, 32
      %2141 = vsyncadd [#allocation3], %s2140
      %s2142 = sshll.u32 [#allocation2], 4
      %s2143 = int_to_ptr.vmem [resolvable:$true] %s2142
      %2148 = dma.vmem_to_hbm [thread:$0]  %s2143, 32, %s7, [#allocation3], 32, 32, 2
    $region33: #{mynn_forward.1} parent=1 // pred_fallthru
      _
    // Predicated region
    $region34: #{mynn_forward.1} parent=1 // pred_check
      _
    $region35: #{mynn_forward.1} parent=1 // pred_check_branch
      %2150 = sbr.rel (0) target = $region37
    $region36: #{mynn_forward.1} parent=1 // pred_region
      %2151 = dma.done [#allocation3], 128
    $region37: #{mynn_forward.1} parent=1 // pred_fallthru
      _
    %2152 = vsyncpa [#allocation3], 1

</llo_original>
